<compile_context>
chip_gen: v6e
topology: v6e:2x2x1
jax: 0.10.0
libtpu: 0.0.40
codegen_flags: <defaults>
</compile_context>

<pallas_src>
import functools

import numpy as np

import jax
import jax.numpy as jnp
from jax import lax
from jax.experimental import pallas as pl
from jax.experimental.pallas import tpu as pltpu

# Plain Python constants only (never captured jnp arrays).
_BIG = 1e30
_HALF_BIG_BITS = int(np.asarray(0.5e30, dtype=np.float32).view(np.int32))  # f32 bit pattern
_I32_MAX = 2**31 - 1


def _relu(x):
    return jnp.maximum(x, 0.0)


def _mm_bf16(a, b):
    """MXU matmul with bf16 inputs and f32 accumulation (cast only at the MXU boundary)."""
    return jnp.dot(a.astype(jnp.bfloat16), b.astype(jnp.bfloat16),
                   preferred_element_type=jnp.float32)


def _round_up(x, m):
    return ((x + m - 1) // m) * m


def _vmem_capacity_bytes():
    try:
        return int(pltpu.get_tpu_info().vmem_capacity_bytes)
    except Exception:
        return 128 * 2**20


# --------------------------------------------------------------------------------------
# DynamicEdgeConv kernel: one grid step processes a tile of query rows against all nodes.
# --------------------------------------------------------------------------------------
def _edge_conv_kernel(xq_ref, xall_t_ref, p_all_ref, p_q_ref, xsq_ref,
                      bq_ref, bk_ref, wc_ref, b1_ref, w2_ref, b2_ref,
                      w3_ref, b3_ref, out_ref, *, k, tile_rows, idx_bits):
    t = tile_rows
    xq = xq_ref[...]                        # (T, F_in)   query rows of this tile
    xall_t = xall_t_ref[...]                # (F_in, BN)  all nodes, lane-dense in BN
    bn = xall_t.shape[1]

    # ---- pairwise squared distances (matmul form; f32 keeps kNN ordering exact) --------
    cross = jnp.dot(xq, xall_t, preferred_element_type=jnp.float32)     # (T, BN)
    q_sq = jnp.sum(xq * xq, axis=1, keepdims=True)                      # (T, 1)
    d = jnp.maximum(q_sq + xsq_ref[...] - 2.0 * cross, 0.0)             # >= 0 for bit ordering

    # ---- mask other-graph columns and the self column (self handled analytically) ------
    col_i = lax.broadcasted_iota(jnp.int32, (t, bn), 1)                  # global column index
    row_i = lax.broadcasted_iota(jnp.int32, (t, 1), 0) + pl.program_id(0) * t
    keep = jnp.logical_and(bq_ref[...] == bk_ref[...], col_i != row_i)   # (T, BN) bool
    d = jnp.where(keep, d, _BIG)

    # ---- pack column index into the low mantissa bits -> one int32 min per pick --------
    # For non-negative f32, int32 bit-pattern order == value order; OR-ing the column index
    # into the low idx_bits bits gives a unique key per (row, col) with lowest-index
    # tie-break.  Order can only flip for distances within ~2^-(23-idx_bits) relative,
    # below the bf16 noise already accepted downstream.
    idx_mask = (1 << idx_bits) - 1
    key = (pltpu.bitcast(d, jnp.int32) & ~idx_mask) | col_i              # (T, BN) int32

    # ---- k-invariant message-MLP pieces (hoisted) ---------------------------------------
    base = _mm_bf16(xq, wc_ref[...]) + b1_ref[...]                       # (T, H1) = x@(wa-wb)+b1
    p_all = p_all_ref[...]                                               # (BN, H1) bf16
    p_q = p_q_ref[...].astype(jnp.float32)                               # (T, H1)  = x@wb (self)
    w2 = w2_ref[...]
    b2 = b2_ref[...]

    def msg_h2(xn_proj):                                                 # neighbour's wb-proj
        h1 = _relu(base + xn_proj)                                       # (T, H1)
        return _relu(_mm_bf16(h1, w2) + b2)                              # (T, H2)

    # ---- self neighbour analytically, then k-1 nearest others ---------------------------
    acc = msg_h2(p_q)                                                    # (T, H2) f32 accum
    for _ in range(k - 1):
        minkey = jnp.min(key, axis=1, keepdims=True)                     # (T, 1) single reduce
        hit = key == minkey                                              # exact one-hot (T, BN)
        key = jnp.where(hit, _I32_MAX, key)                              # exclude chosen column
        xn = jnp.dot(hit.astype(jnp.bfloat16), p_all,
                     preferred_element_type=jnp.float32)                 # (T, H1) gather of P
        # TODO(synk): graphs with < k nodes fall back to self-edges here; PyG would instead
        #             average over fewer neighbours (different divisor).
        xn = jnp.where(minkey < _HALF_BIG_BITS, xn, p_q)
        acc = acc + msg_h2(xn)

    # mean over k commutes with the plain (no-activation) last layer -> apply w3 once.
    out_ref[...] = _mm_bf16(acc * (1.0 / k), w3_ref[...]) + b3_ref[...]


def _edge_conv(x, x_t, p, x_sq_row, batch_col, batch_row, params, k, tile_rows, vmem_cap):
    wc, b1, w2, b2, w3, b3 = params
    bn, f_in = x.shape
    h1d, h2d, f_out = w2.shape[0], w2.shape[1], w3.shape[1]
    n_tiles = bn // tile_rows
    idx_bits = max(1, (bn - 1).bit_length())

    flops_per_tile = 2 * (
        tile_rows * bn * f_in                  # distance cross matmul
        + tile_rows * f_in * h1d               # base = xq @ wc
        + (k - 1) * tile_rows * bn * h1d       # one-hot gather of P per pick
        + k * tile_rows * h1d * h2d            # message layer 2
        + tile_rows * h2d * f_out)             # layer 3 once (mean commutes with linear)
    weight_bytes = 4 * (f_in * h1d + h1d * h2d + h2d * f_out + h1d + h2d + f_out)
    bytes_accessed = bn * (8 * f_in + 4 * h1d + 4 * f_out + 12) + weight_bytes

    # Working set is dominated by the live (T, BN) panels (distance / key / hit temps).
    panel = tile_rows * bn * 4
    work = 4 * panel \
        + 2 * bn * (4 * f_in + 2 * h1d + 8) \
        + 4 * tile_rows * (f_in + 3 * h1d + 2 * h2d + f_out) \
        + 2 * weight_bytes
    vmem_limit = int(min(0.75 * vmem_cap, max(2 * work, 32 * 2**20)))

    kern = functools.partial(_edge_conv_kernel, k=k, tile_rows=tile_rows, idx_bits=idx_bits)
    return pl.pallas_call(
        kern,
        grid=(n_tiles,),
        out_shape=jax.ShapeDtypeStruct((bn, f_out), jnp.float32),
        in_specs=[
            pl.BlockSpec((tile_rows, f_in), lambda i: (i, 0)),   # query-row tile
            pl.BlockSpec((f_in, bn), lambda i: (0, 0)),          # nodes, transposed (lane-dense BN)
            pl.BlockSpec((bn, h1d), lambda i: (0, 0)),           # P = x @ wb, bf16, VMEM resident
            pl.BlockSpec((tile_rows, h1d), lambda i: (i, 0)),    # P rows of this tile (self msg)
            pl.BlockSpec((1, bn), lambda i: (0, 0)),             # ||x_j||^2 row
            pl.BlockSpec((tile_rows, 1), lambda i: (i, 0)),      # batch id of query rows
            pl.BlockSpec((1, bn), lambda i: (0, 0)),             # batch id of all nodes
            pl.BlockSpec(wc.shape, lambda i: (0, 0)),
            pl.BlockSpec(b1.shape, lambda i: (0, 0)),
            pl.BlockSpec(w2.shape, lambda i: (0, 0)),
            pl.BlockSpec(b2.shape, lambda i: (0, 0)),
            pl.BlockSpec(w3.shape, lambda i: (0, 0)),
            pl.BlockSpec(b3.shape, lambda i: (0, 0)),
        ],
        out_specs=pl.BlockSpec((tile_rows, f_out), lambda i: (i, 0)),
        compiler_params=pltpu.CompilerParams(
            dimension_semantics=("parallel",),
            vmem_limit_bytes=vmem_limit),
        cost_estimate=pl.CostEstimate(
            flops=int(n_tiles * flops_per_tile),
            transcendentals=0,
            bytes_accessed=int(bytes_accessed)),
    )(x, x_t, p, p, x_sq_row, batch_col, batch_row, wc, b1, w2, b2, w3, b3)


# --------------------------------------------------------------------------------------
# global_mean_pool + final MLP head: tiny (M = num_graphs), kept in its own small call.
# --------------------------------------------------------------------------------------
def _pool_head_kernel(pool_ref, h_ref,
                      w1_ref, b1_ref, w2_ref, b2_ref, w3_ref, b3_ref,
                      w4_ref, b4_ref, w5_ref, b5_ref, out_ref):
    g = jnp.dot(pool_ref[...], h_ref[...], preferred_element_type=jnp.float32)
    for w_ref, b_ref in ((w1_ref, b1_ref), (w2_ref, b2_ref), (w3_ref, b3_ref),
                         (w4_ref, b4_ref), (w5_ref, b5_ref)):
        # nn.Sequential puts a ReLU after every Linear, including the last one.
        g = _relu(jnp.dot(g, w_ref[...], preferred_element_type=jnp.float32) + b_ref[...])
    out_ref[...] = g


def _pool_head(pool_mat, h, head_params):
    num_graphs = pool_mat.shape[0]
    n_out = head_params[-2].shape[1]
    inputs = (pool_mat, h) + tuple(head_params)
    return pl.pallas_call(
        _pool_head_kernel,
        out_shape=jax.ShapeDtypeStruct((num_graphs, n_out), jnp.float32),
        in_specs=[pl.BlockSpec(memory_space=pltpu.MemorySpace.VMEM)] * len(inputs),
        out_specs=pl.BlockSpec(memory_space=pltpu.MemorySpace.VMEM),
    )(*inputs)


# --------------------------------------------------------------------------------------
# Forward pass
# --------------------------------------------------------------------------------------
def gnn_encoder_forward(x, batch, num_graphs, params, k=5):
    edge1, edge2, head = params
    x = x.astype(jnp.float32)
    batch = batch.astype(jnp.int32)
    bn = x.shape[0]

    # Generation-aware tiling: halve the query tile on 64 MiB-VMEM parts (v7x) so the
    # (T, BN) panels fit with headroom and the parallel grid axis has >= 2 steps.
    vmem_cap = _vmem_capacity_bytes()
    base_tile = 128 if vmem_cap <= 64 * 2**20 else 256
    tile_rows = base_tile if bn > base_tile else _round_up(bn, 16)
    bn_pad = _round_up(bn, tile_rows)

    # Pad the node dimension to a multiple of the tile; pad rows carry batch id -1 so the
    # same-graph mask and the pool matrix exclude them.
    pad = bn_pad - bn
    if pad:
        x = jnp.concatenate([x, jnp.zeros((pad, x.shape[1]), jnp.float32)], axis=0)
        batch = jnp.concatenate([batch, jnp.full((pad,), -1, jnp.int32)], axis=0)

    batch_col = batch.reshape(bn_pad, 1)        # (BN, 1) int32
    batch_row = batch.reshape(1, bn_pad)        # (1, BN) int32

    h = x
    for prm in (edge1, edge2):                  # layer2 kNN runs on the new latent features
        wa, wb, b1, w2, b2, w3, b3 = prm
        wc = wa - wb                            # fused "self" weight: x@wa - x@wb == x@wc
        p = (h @ wb).astype(jnp.bfloat16)       # neighbour wb-projection, hoisted to XLA
        h_sq = jnp.sum(h * h, axis=1).reshape(1, bn_pad)
        h = _edge_conv(h, h.T, p, h_sq, batch_col, batch_row,
                       (wc, b1, w2, b2, w3, b3), k, tile_rows, vmem_cap)

    # mean-pool matrix (B, BN): row b holds 1/N_b for nodes of graph b (pad columns are 0)
    onehot = (batch_row == jnp.arange(num_graphs, dtype=jnp.int32)[:, None]).astype(jnp.float32)
    pool_mat = onehot / jnp.maximum(jnp.sum(onehot, axis=1, keepdims=True), 1.0)

    return _pool_head(pool_mat, h, head)


# --------------------------------------------------------------------------------------
# Parameter init (Linear weights stored [in, out] so y = x @ W + b)
# --------------------------------------------------------------------------------------
def _linear(key, fan_in, fan_out, scale=0.2):
    kw, kb = jax.random.split(key)
    w = scale * jax.random.normal(kw, (fan_in, fan_out), jnp.float32)
    b = scale * jax.random.normal(kb, (1, fan_out), jnp.float32)
    return w, b


def init_params(key, f_node, f_lat, hidden=(64, 128)):
    keys = jax.random.split(key, 11)

    def edge_params(ks, f_in):
        # EdgeConv MLP [2*f_in, hidden..., f_lat]; first weight split into (self | diff)
        w, b1 = _linear(ks[0], 2 * f_in, hidden[0])
        wa, wb = w[:f_in], w[f_in:]
        w2, b2 = _linear(ks[1], hidden[0], hidden[1])
        w3, b3 = _linear(ks[2], hidden[1], f_lat)
        return (wa, wb, b1, w2, b2, w3, b3)

    edge1 = edge_params(keys[0:3], f_node)
    edge2 = edge_params(keys[3:6], f_lat)

    # final MLP: LazyLinear(64) -> 128 -> 32 -> 16 -> 2
    dims = [f_lat, 64, 128, 32, 16, 2]
    head = []
    for i in range(5):
        w, b = _linear(keys[6 + i], dims[i], dims[i + 1])
        head += [w, b]
    return edge1, edge2, tuple(head)


if __name__ == "__main__":
    key = jax.random.PRNGKey(0)
    k_x, k_p = jax.random.split(key)

    B, N = 2, 16                 # 2 graphs, 16 nodes each
    F_NODE = 4                   # node feature dim (n_edge_features = 2*F_NODE = 8)
    F_LAT = 32                   # n_latent_edge_features
    K = 5

    # data.x: [B*N, F_NODE]; data.batch: [B*N]
    x = jax.random.normal(k_x, (B * N, F_NODE), jnp.float32)
    batch = jnp.repeat(jnp.arange(B, dtype=jnp.int32), N)

    params = init_params(k_p, F_NODE, F_LAT)

    out = gnn_encoder_forward(x, batch, B, params, k=K)
    out = jax.block_until_ready(out)
    assert out.shape == (B, 2) and out.dtype == jnp.float32
    print("KERNEL_OK")
</pallas_src>

<mosaic_0001>
module attributes {stable_mosaic.version = 11 : i64} {
  func.func @_edge_conv_kernel(%arg0: i32, %arg1: memref<32x4xf32, #tpu.memory_space<vmem>>, %arg2: memref<4x32xf32, #tpu.memory_space<vmem>>, %arg3: memref<32x64xbf16, #tpu.memory_space<vmem>>, %arg4: memref<32x64xbf16, #tpu.memory_space<vmem>>, %arg5: memref<1x32xf32, #tpu.memory_space<vmem>>, %arg6: memref<32x1xi32, #tpu.memory_space<vmem>>, %arg7: memref<1x32xi32, #tpu.memory_space<vmem>>, %arg8: memref<4x64xf32, #tpu.memory_space<vmem>>, %arg9: memref<1x64xf32, #tpu.memory_space<vmem>>, %arg10: memref<64x128xf32, #tpu.memory_space<vmem>>, %arg11: memref<1x128xf32, #tpu.memory_space<vmem>>, %arg12: memref<128x32xf32, #tpu.memory_space<vmem>>, %arg13: memref<1x32xf32, #tpu.memory_space<vmem>>, %arg14: memref<32x32xf32, #tpu.memory_space<vmem>>) attributes {dimension_semantics = [#tpu.dimension_semantics<parallel>], iteration_bounds = array<i64: 1>, scalar_prefetch = 0 : i64, scratch_operands = 0 : i64, tpu.core_type = #tpu.core_type<tc>, window_params = [{transform_indices = @transform_0, window_bounds = array<i64: 32, 4>}, {pipeline_mode = #tpu.pipeline_mode<synchronous>, transform_indices = @transform_1, window_bounds = array<i64: 4, 32>}, {pipeline_mode = #tpu.pipeline_mode<synchronous>, transform_indices = @transform_2, window_bounds = array<i64: 32, 64>}, {transform_indices = @transform_3, window_bounds = array<i64: 32, 64>}, {pipeline_mode = #tpu.pipeline_mode<synchronous>, transform_indices = @transform_4, window_bounds = array<i64: 1, 32>}, {transform_indices = @transform_5, window_bounds = array<i64: 32, 1>}, {pipeline_mode = #tpu.pipeline_mode<synchronous>, transform_indices = @transform_6, window_bounds = array<i64: 1, 32>}, {pipeline_mode = #tpu.pipeline_mode<synchronous>, transform_indices = @transform_7, window_bounds = array<i64: 4, 64>}, {pipeline_mode = #tpu.pipeline_mode<synchronous>, transform_indices = @transform_8, window_bounds = array<i64: 1, 64>}, {pipeline_mode = #tpu.pipeline_mode<synchronous>, transform_indices = @transform_9, window_bounds = array<i64: 64, 128>}, {pipeline_mode = #tpu.pipeline_mode<synchronous>, transform_indices = @transform_10, window_bounds = array<i64: 1, 128>}, {pipeline_mode = #tpu.pipeline_mode<synchronous>, transform_indices = @transform_11, window_bounds = array<i64: 128, 32>}, {pipeline_mode = #tpu.pipeline_mode<synchronous>, transform_indices = @transform_12, window_bounds = array<i64: 1, 32>}, {transform_indices = @transform_13, window_bounds = array<i64: 32, 32>}]} {
    %c0 = arith.constant 0 : index
    %c0_0 = arith.constant 0 : index
    %0 = vector.load %arg1[%c0, %c0_0] : memref<32x4xf32, #tpu.memory_space<vmem>>, vector<32x4xf32>
    %c0_1 = arith.constant 0 : index
    %c0_2 = arith.constant 0 : index
    %1 = vector.load %arg2[%c0_1, %c0_2] : memref<4x32xf32, #tpu.memory_space<vmem>>, vector<4x32xf32>
    %cst = arith.constant dense<0.000000e+00> : vector<32x32xf32>
    %2 = tpu.matmul %0, %1, %cst {dimension_numbers = #tpu.dot_dimension_numbers<[1], [0], [0], [1], [0, 0, 1, 1], [], []>} : vector<32x4xf32>, vector<4x32xf32>, vector<32x32xf32> -> vector<32x32xf32>
    %3 = arith.mulf %0, %0 : vector<32x4xf32>
    %cst_3 = arith.constant dense<0.000000e+00> : vector<32xf32>
    %4 = vector.multi_reduction <add>, %3, %cst_3 [1] : vector<32x4xf32> to vector<32xf32>
    %5 = vector.shape_cast %4 : vector<32xf32> to vector<32x1xf32>
    %c0_4 = arith.constant 0 : index
    %c0_5 = arith.constant 0 : index
    %6 = vector.load %arg5[%c0_4, %c0_5] : memref<1x32xf32, #tpu.memory_space<vmem>>, vector<1x32xf32>
    %7 = vector.broadcast %5 : vector<32x1xf32> to vector<32x32xf32>
    %8 = vector.broadcast %6 : vector<1x32xf32> to vector<32x32xf32>
    %9 = arith.addf %7, %8 : vector<32x32xf32>
    %cst_6 = arith.constant 2.000000e+00 : f32
    %10 = vector.broadcast %cst_6 : f32 to vector<32x32xf32>
    %11 = arith.mulf %10, %2 : vector<32x32xf32>
    %12 = arith.subf %9, %11 : vector<32x32xf32>
    %cst_7 = arith.constant 0.000000e+00 : f32
    %13 = vector.broadcast %cst_7 : f32 to vector<32x32xf32>
    %14 = arith.maximumf %12, %13 : vector<32x32xf32>
    %15 = tpu.iota {dimensions = array<i32: 1>} : vector<32x32xi32>
    %16 = tpu.iota {dimensions = array<i32: 0>} : vector<32x1xi32>
    %c32_i32 = arith.constant 32 : i32
    %17 = arith.muli %arg0, %c32_i32 : i32
    %18 = vector.broadcast %17 : i32 to vector<32x1xi32>
    %19 = arith.addi %16, %18 : vector<32x1xi32>
    %c0_8 = arith.constant 0 : index
    %c0_9 = arith.constant 0 : index
    %20 = vector.load %arg6[%c0_8, %c0_9] : memref<32x1xi32, #tpu.memory_space<vmem>>, vector<32x1xi32>
    %c0_10 = arith.constant 0 : index
    %c0_11 = arith.constant 0 : index
    %21 = vector.load %arg7[%c0_10, %c0_11] : memref<1x32xi32, #tpu.memory_space<vmem>>, vector<1x32xi32>
    %22 = vector.broadcast %20 : vector<32x1xi32> to vector<32x32xi32>
    %23 = vector.broadcast %21 : vector<1x32xi32> to vector<32x32xi32>
    %24 = arith.cmpi eq, %22, %23 : vector<32x32xi32>
    %25 = vector.broadcast %19 : vector<32x1xi32> to vector<32x32xi32>
    %26 = arith.cmpi ne, %15, %25 : vector<32x32xi32>
    %27 = arith.andi %24, %26 : vector<32x32xi1>
    %cst_12 = arith.constant 1.000000e+30 : f32
    %28 = vector.broadcast %cst_12 : f32 to vector<32x32xf32>
    %29 = arith.select %27, %14, %28 : vector<32x32xi1>, vector<32x32xf32>
    %30 = tpu.bitcast %29 : vector<32x32xf32> -> vector<32x32xi32>
    %c-32_i32 = arith.constant -32 : i32
    %31 = vector.broadcast %c-32_i32 : i32 to vector<32x32xi32>
    %32 = arith.andi %30, %31 : vector<32x32xi32>
    %33 = arith.ori %32, %15 : vector<32x32xi32>
    %c0_13 = arith.constant 0 : index
    %c0_14 = arith.constant 0 : index
    %34 = vector.load %arg8[%c0_13, %c0_14] : memref<4x64xf32, #tpu.memory_space<vmem>>, vector<4x64xf32>
    %35 = arith.truncf %0 : vector<32x4xf32> to vector<32x4xbf16>
    %36 = arith.truncf %34 : vector<4x64xf32> to vector<4x64xbf16>
    %cst_15 = arith.constant dense<0.000000e+00> : vector<32x64xf32>
    %37 = tpu.matmul %35, %36, %cst_15 {dimension_numbers = #tpu.dot_dimension_numbers<[1], [0], [0], [1], [0, 0, 1, 1], [], []>} : vector<32x4xbf16>, vector<4x64xbf16>, vector<32x64xf32> -> vector<32x64xf32>
    %c0_16 = arith.constant 0 : index
    %c0_17 = arith.constant 0 : index
    %38 = vector.load %arg9[%c0_16, %c0_17] : memref<1x64xf32, #tpu.memory_space<vmem>>, vector<1x64xf32>
    %39 = vector.broadcast %38 : vector<1x64xf32> to vector<32x64xf32>
    %40 = arith.addf %37, %39 : vector<32x64xf32>
    %c0_18 = arith.constant 0 : index
    %c0_19 = arith.constant 0 : index
    %41 = vector.load %arg3[%c0_18, %c0_19] : memref<32x64xbf16, #tpu.memory_space<vmem>>, vector<32x64xbf16>
    %c0_20 = arith.constant 0 : index
    %c0_21 = arith.constant 0 : index
    %42 = vector.load %arg4[%c0_20, %c0_21] : memref<32x64xbf16, #tpu.memory_space<vmem>>, vector<32x64xbf16>
    %43 = arith.extf %42 : vector<32x64xbf16> to vector<32x64xf32>
    %c0_22 = arith.constant 0 : index
    %c0_23 = arith.constant 0 : index
    %44 = vector.load %arg10[%c0_22, %c0_23] : memref<64x128xf32, #tpu.memory_space<vmem>>, vector<64x128xf32>
    %c0_24 = arith.constant 0 : index
    %c0_25 = arith.constant 0 : index
    %45 = vector.load %arg11[%c0_24, %c0_25] : memref<1x128xf32, #tpu.memory_space<vmem>>, vector<1x128xf32>
    %46 = arith.addf %40, %43 : vector<32x64xf32>
    %cst_26 = arith.constant 0.000000e+00 : f32
    %47 = vector.broadcast %cst_26 : f32 to vector<32x64xf32>
    %48 = arith.maximumf %46, %47 : vector<32x64xf32>
    %49 = arith.truncf %48 : vector<32x64xf32> to vector<32x64xbf16>
    %50 = arith.truncf %44 : vector<64x128xf32> to vector<64x128xbf16>
    %cst_27 = arith.constant dense<0.000000e+00> : vector<32x128xf32>
    %51 = tpu.matmul %49, %50, %cst_27 {dimension_numbers = #tpu.dot_dimension_numbers<[1], [0], [0], [1], [0, 0, 1, 1], [], []>} : vector<32x64xbf16>, vector<64x128xbf16>, vector<32x128xf32> -> vector<32x128xf32>
    %52 = vector.broadcast %45 : vector<1x128xf32> to vector<32x128xf32>
    %53 = arith.addf %51, %52 : vector<32x128xf32>
    %cst_28 = arith.constant 0.000000e+00 : f32
    %54 = vector.broadcast %cst_28 : f32 to vector<32x128xf32>
    %55 = arith.maximumf %53, %54 : vector<32x128xf32>
    %cst_29 = arith.constant dense<2147483647> : vector<32xi32>
    %56 = vector.multi_reduction <minsi>, %33, %cst_29 [1] : vector<32x32xi32> to vector<32xi32>
    %57 = vector.shape_cast %56 : vector<32xi32> to vector<32x1xi32>
    %58 = vector.broadcast %57 : vector<32x1xi32> to vector<32x32xi32>
    %59 = arith.cmpi eq, %33, %58 : vector<32x32xi32>
    %c2147483647_i32 = arith.constant 2147483647 : i32
    %60 = vector.broadcast %c2147483647_i32 : i32 to vector<32x32xi32>
    %61 = arith.select %59, %60, %33 : vector<32x32xi1>, vector<32x32xi32>
    %62 = arith.extui %59 : vector<32x32xi1> to vector<32x32xi32>
    %63 = arith.sitofp %62 : vector<32x32xi32> to vector<32x32xf32>
    %64 = arith.truncf %63 : vector<32x32xf32> to vector<32x32xbf16>
    %cst_30 = arith.constant dense<0.000000e+00> : vector<32x64xf32>
    %65 = tpu.matmul %64, %41, %cst_30 {dimension_numbers = #tpu.dot_dimension_numbers<[1], [0], [0], [1], [0, 0, 1, 1], [], []>} : vector<32x32xbf16>, vector<32x64xbf16>, vector<32x64xf32> -> vector<32x64xf32>
    %c1892283082_i32 = arith.constant 1892283082 : i32
    %66 = vector.broadcast %c1892283082_i32 : i32 to vector<32x1xi32>
    %67 = arith.cmpi slt, %57, %66 : vector<32x1xi32>
    %68 = vector.shape_cast %67 : vector<32x1xi1> to vector<32x1xi1>
    %69 = vector.broadcast %68 : vector<32x1xi1> to vector<32x64xi1>
    %70 = arith.select %69, %65, %43 : vector<32x64xi1>, vector<32x64xf32>
    %71 = arith.addf %40, %70 : vector<32x64xf32>
    %cst_31 = arith.constant 0.000000e+00 : f32
    %72 = vector.broadcast %cst_31 : f32 to vector<32x64xf32>
    %73 = arith.maximumf %71, %72 : vector<32x64xf32>
    %74 = arith.truncf %73 : vector<32x64xf32> to vector<32x64xbf16>
    %75 = arith.truncf %44 : vector<64x128xf32> to vector<64x128xbf16>
    %cst_32 = arith.constant dense<0.000000e+00> : vector<32x128xf32>
    %76 = tpu.matmul %74, %75, %cst_32 {dimension_numbers = #tpu.dot_dimension_numbers<[1], [0], [0], [1], [0, 0, 1, 1], [], []>} : vector<32x64xbf16>, vector<64x128xbf16>, vector<32x128xf32> -> vector<32x128xf32>
    %77 = vector.broadcast %45 : vector<1x128xf32> to vector<32x128xf32>
    %78 = arith.addf %76, %77 : vector<32x128xf32>
    %cst_33 = arith.constant 0.000000e+00 : f32
    %79 = vector.broadcast %cst_33 : f32 to vector<32x128xf32>
    %80 = arith.maximumf %78, %79 : vector<32x128xf32>
    %81 = arith.addf %55, %80 : vector<32x128xf32>
    %cst_34 = arith.constant dense<2147483647> : vector<32xi32>
    %82 = vector.multi_reduction <minsi>, %61, %cst_34 [1] : vector<32x32xi32> to vector<32xi32>
    %83 = vector.shape_cast %82 : vector<32xi32> to vector<32x1xi32>
    %84 = vector.broadcast %83 : vector<32x1xi32> to vector<32x32xi32>
    %85 = arith.cmpi eq, %61, %84 : vector<32x32xi32>
    %c2147483647_i32_35 = arith.constant 2147483647 : i32
    %86 = vector.broadcast %c2147483647_i32_35 : i32 to vector<32x32xi32>
    %87 = arith.select %85, %86, %61 : vector<32x32xi1>, vector<32x32xi32>
    %88 = arith.extui %85 : vector<32x32xi1> to vector<32x32xi32>
    %89 = arith.sitofp %88 : vector<32x32xi32> to vector<32x32xf32>
    %90 = arith.truncf %89 : vector<32x32xf32> to vector<32x32xbf16>
    %cst_36 = arith.constant dense<0.000000e+00> : vector<32x64xf32>
    %91 = tpu.matmul %90, %41, %cst_36 {dimension_numbers = #tpu.dot_dimension_numbers<[1], [0], [0], [1], [0, 0, 1, 1], [], []>} : vector<32x32xbf16>, vector<32x64xbf16>, vector<32x64xf32> -> vector<32x64xf32>
    %c1892283082_i32_37 = arith.constant 1892283082 : i32
    %92 = vector.broadcast %c1892283082_i32_37 : i32 to vector<32x1xi32>
    %93 = arith.cmpi slt, %83, %92 : vector<32x1xi32>
    %94 = vector.shape_cast %93 : vector<32x1xi1> to vector<32x1xi1>
    %95 = vector.broadcast %94 : vector<32x1xi1> to vector<32x64xi1>
    %96 = arith.select %95, %91, %43 : vector<32x64xi1>, vector<32x64xf32>
    %97 = arith.addf %40, %96 : vector<32x64xf32>
    %cst_38 = arith.constant 0.000000e+00 : f32
    %98 = vector.broadcast %cst_38 : f32 to vector<32x64xf32>
    %99 = arith.maximumf %97, %98 : vector<32x64xf32>
    %100 = arith.truncf %99 : vector<32x64xf32> to vector<32x64xbf16>
    %101 = arith.truncf %44 : vector<64x128xf32> to vector<64x128xbf16>
    %cst_39 = arith.constant dense<0.000000e+00> : vector<32x128xf32>
    %102 = tpu.matmul %100, %101, %cst_39 {dimension_numbers = #tpu.dot_dimension_numbers<[1], [0], [0], [1], [0, 0, 1, 1], [], []>} : vector<32x64xbf16>, vector<64x128xbf16>, vector<32x128xf32> -> vector<32x128xf32>
    %103 = vector.broadcast %45 : vector<1x128xf32> to vector<32x128xf32>
    %104 = arith.addf %102, %103 : vector<32x128xf32>
    %cst_40 = arith.constant 0.000000e+00 : f32
    %105 = vector.broadcast %cst_40 : f32 to vector<32x128xf32>
    %106 = arith.maximumf %104, %105 : vector<32x128xf32>
    %107 = arith.addf %81, %106 : vector<32x128xf32>
    %cst_41 = arith.constant dense<2147483647> : vector<32xi32>
    %108 = vector.multi_reduction <minsi>, %87, %cst_41 [1] : vector<32x32xi32> to vector<32xi32>
    %109 = vector.shape_cast %108 : vector<32xi32> to vector<32x1xi32>
    %110 = vector.broadcast %109 : vector<32x1xi32> to vector<32x32xi32>
    %111 = arith.cmpi eq, %87, %110 : vector<32x32xi32>
    %c2147483647_i32_42 = arith.constant 2147483647 : i32
    %112 = vector.broadcast %c2147483647_i32_42 : i32 to vector<32x32xi32>
    %113 = arith.select %111, %112, %87 : vector<32x32xi1>, vector<32x32xi32>
    %114 = arith.extui %111 : vector<32x32xi1> to vector<32x32xi32>
    %115 = arith.sitofp %114 : vector<32x32xi32> to vector<32x32xf32>
    %116 = arith.truncf %115 : vector<32x32xf32> to vector<32x32xbf16>
    %cst_43 = arith.constant dense<0.000000e+00> : vector<32x64xf32>
    %117 = tpu.matmul %116, %41, %cst_43 {dimension_numbers = #tpu.dot_dimension_numbers<[1], [0], [0], [1], [0, 0, 1, 1], [], []>} : vector<32x32xbf16>, vector<32x64xbf16>, vector<32x64xf32> -> vector<32x64xf32>
    %c1892283082_i32_44 = arith.constant 1892283082 : i32
    %118 = vector.broadcast %c1892283082_i32_44 : i32 to vector<32x1xi32>
    %119 = arith.cmpi slt, %109, %118 : vector<32x1xi32>
    %120 = vector.shape_cast %119 : vector<32x1xi1> to vector<32x1xi1>
    %121 = vector.broadcast %120 : vector<32x1xi1> to vector<32x64xi1>
    %122 = arith.select %121, %117, %43 : vector<32x64xi1>, vector<32x64xf32>
    %123 = arith.addf %40, %122 : vector<32x64xf32>
    %cst_45 = arith.constant 0.000000e+00 : f32
    %124 = vector.broadcast %cst_45 : f32 to vector<32x64xf32>
    %125 = arith.maximumf %123, %124 : vector<32x64xf32>
    %126 = arith.truncf %125 : vector<32x64xf32> to vector<32x64xbf16>
    %127 = arith.truncf %44 : vector<64x128xf32> to vector<64x128xbf16>
    %cst_46 = arith.constant dense<0.000000e+00> : vector<32x128xf32>
    %128 = tpu.matmul %126, %127, %cst_46 {dimension_numbers = #tpu.dot_dimension_numbers<[1], [0], [0], [1], [0, 0, 1, 1], [], []>} : vector<32x64xbf16>, vector<64x128xbf16>, vector<32x128xf32> -> vector<32x128xf32>
    %129 = vector.broadcast %45 : vector<1x128xf32> to vector<32x128xf32>
    %130 = arith.addf %128, %129 : vector<32x128xf32>
    %cst_47 = arith.constant 0.000000e+00 : f32
    %131 = vector.broadcast %cst_47 : f32 to vector<32x128xf32>
    %132 = arith.maximumf %130, %131 : vector<32x128xf32>
    %133 = arith.addf %107, %132 : vector<32x128xf32>
    %cst_48 = arith.constant dense<2147483647> : vector<32xi32>
    %134 = vector.multi_reduction <minsi>, %113, %cst_48 [1] : vector<32x32xi32> to vector<32xi32>
    %135 = vector.shape_cast %134 : vector<32xi32> to vector<32x1xi32>
    %136 = vector.broadcast %135 : vector<32x1xi32> to vector<32x32xi32>
    %137 = arith.cmpi eq, %113, %136 : vector<32x32xi32>
    %138 = arith.extui %137 : vector<32x32xi1> to vector<32x32xi32>
    %139 = arith.sitofp %138 : vector<32x32xi32> to vector<32x32xf32>
    %140 = arith.truncf %139 : vector<32x32xf32> to vector<32x32xbf16>
    %cst_49 = arith.constant dense<0.000000e+00> : vector<32x64xf32>
    %141 = tpu.matmul %140, %41, %cst_49 {dimension_numbers = #tpu.dot_dimension_numbers<[1], [0], [0], [1], [0, 0, 1, 1], [], []>} : vector<32x32xbf16>, vector<32x64xbf16>, vector<32x64xf32> -> vector<32x64xf32>
    %c1892283082_i32_50 = arith.constant 1892283082 : i32
    %142 = vector.broadcast %c1892283082_i32_50 : i32 to vector<32x1xi32>
    %143 = arith.cmpi slt, %135, %142 : vector<32x1xi32>
    %144 = vector.shape_cast %143 : vector<32x1xi1> to vector<32x1xi1>
    %145 = vector.broadcast %144 : vector<32x1xi1> to vector<32x64xi1>
    %146 = arith.select %145, %141, %43 : vector<32x64xi1>, vector<32x64xf32>
    %147 = arith.addf %40, %146 : vector<32x64xf32>
    %cst_51 = arith.constant 0.000000e+00 : f32
    %148 = vector.broadcast %cst_51 : f32 to vector<32x64xf32>
    %149 = arith.maximumf %147, %148 : vector<32x64xf32>
    %150 = arith.truncf %149 : vector<32x64xf32> to vector<32x64xbf16>
    %151 = arith.truncf %44 : vector<64x128xf32> to vector<64x128xbf16>
    %cst_52 = arith.constant dense<0.000000e+00> : vector<32x128xf32>
    %152 = tpu.matmul %150, %151, %cst_52 {dimension_numbers = #tpu.dot_dimension_numbers<[1], [0], [0], [1], [0, 0, 1, 1], [], []>} : vector<32x64xbf16>, vector<64x128xbf16>, vector<32x128xf32> -> vector<32x128xf32>
    %153 = vector.broadcast %45 : vector<1x128xf32> to vector<32x128xf32>
    %154 = arith.addf %152, %153 : vector<32x128xf32>
    %cst_53 = arith.constant 0.000000e+00 : f32
    %155 = vector.broadcast %cst_53 : f32 to vector<32x128xf32>
    %156 = arith.maximumf %154, %155 : vector<32x128xf32>
    %157 = arith.addf %133, %156 : vector<32x128xf32>
    %cst_54 = arith.constant 2.000000e-01 : f32
    %158 = vector.broadcast %cst_54 : f32 to vector<32x128xf32>
    %159 = arith.mulf %157, %158 : vector<32x128xf32>
    %c0_55 = arith.constant 0 : index
    %c0_56 = arith.constant 0 : index
    %160 = vector.load %arg12[%c0_55, %c0_56] : memref<128x32xf32, #tpu.memory_space<vmem>>, vector<128x32xf32>
    %161 = arith.truncf %159 : vector<32x128xf32> to vector<32x128xbf16>
    %162 = arith.truncf %160 : vector<128x32xf32> to vector<128x32xbf16>
    %cst_57 = arith.constant dense<0.000000e+00> : vector<32x32xf32>
    %163 = tpu.matmul %161, %162, %cst_57 {dimension_numbers = #tpu.dot_dimension_numbers<[1], [0], [0], [1], [0, 0, 1, 1], [], []>} : vector<32x128xbf16>, vector<128x32xbf16>, vector<32x32xf32> -> vector<32x32xf32>
    %c0_58 = arith.constant 0 : index
    %c0_59 = arith.constant 0 : index
    %164 = vector.load %arg13[%c0_58, %c0_59] : memref<1x32xf32, #tpu.memory_space<vmem>>, vector<1x32xf32>
    %165 = vector.broadcast %164 : vector<1x32xf32> to vector<32x32xf32>
    %166 = arith.addf %163, %165 : vector<32x32xf32>
    %c0_60 = arith.constant 0 : index
    %c0_61 = arith.constant 0 : index
    %167 = vector.load %arg14[%c0_60, %c0_61] : memref<32x32xf32, #tpu.memory_space<vmem>>, vector<32x32xf32>
    tpu.vector_store %arg14[%c0_60, %c0_61], %166 {strides = array<i32>} : memref<32x32xf32, #tpu.memory_space<vmem>>, vector<32x32xf32>,
    return
  }
  func.func @transform_0(%arg0: i32) -> (i32, i32) {
    %c0_i32 = arith.constant 0 : i32
    %c0_i32_0 = arith.constant 0 : i32
    return %arg0, %c0_i32 : i32, i32
  }
  func.func @transform_1(%arg0: i32) -> (i32, i32) {
    %c0_i32 = arith.constant 0 : i32
    %c0_i32_0 = arith.constant 0 : i32
    %c0_i32_1 = arith.constant 0 : i32
    return %c0_i32, %c0_i32_0 : i32, i32
  }
  func.func @transform_2(%arg0: i32) -> (i32, i32) {
    %c0_i32 = arith.constant 0 : i32
    %c0_i32_0 = arith.constant 0 : i32
    %c0_i32_1 = arith.constant 0 : i32
    return %c0_i32, %c0_i32_0 : i32, i32
  }
  func.func @transform_3(%arg0: i32) -> (i32, i32) {
    %c0_i32 = arith.constant 0 : i32
    %c0_i32_0 = arith.constant 0 : i32
    return %arg0, %c0_i32 : i32, i32
  }
  func.func @transform_4(%arg0: i32) -> (i32, i32) {
    %c0_i32 = arith.constant 0 : i32
    %c0_i32_0 = arith.constant 0 : i32
    %c0_i32_1 = arith.constant 0 : i32
    return %c0_i32, %c0_i32_0 : i32, i32
  }
  func.func @transform_5(%arg0: i32) -> (i32, i32) {
    %c0_i32 = arith.constant 0 : i32
    %c0_i32_0 = arith.constant 0 : i32
    return %arg0, %c0_i32 : i32, i32
  }
  func.func @transform_6(%arg0: i32) -> (i32, i32) {
    %c0_i32 = arith.constant 0 : i32
    %c0_i32_0 = arith.constant 0 : i32
    %c0_i32_1 = arith.constant 0 : i32
    return %c0_i32, %c0_i32_0 : i32, i32
  }
  func.func @transform_7(%arg0: i32) -> (i32, i32) {
    %c0_i32 = arith.constant 0 : i32
    %c0_i32_0 = arith.constant 0 : i32
    %c0_i32_1 = arith.constant 0 : i32
    return %c0_i32, %c0_i32_0 : i32, i32
  }
  func.func @transform_8(%arg0: i32) -> (i32, i32) {
    %c0_i32 = arith.constant 0 : i32
    %c0_i32_0 = arith.constant 0 : i32
    %c0_i32_1 = arith.constant 0 : i32
    return %c0_i32, %c0_i32_0 : i32, i32
  }
  func.func @transform_9(%arg0: i32) -> (i32, i32) {
    %c0_i32 = arith.constant 0 : i32
    %c0_i32_0 = arith.constant 0 : i32
    %c0_i32_1 = arith.constant 0 : i32
    return %c0_i32, %c0_i32_0 : i32, i32
  }
  func.func @transform_10(%arg0: i32) -> (i32, i32) {
    %c0_i32 = arith.constant 0 : i32
    %c0_i32_0 = arith.constant 0 : i32
    %c0_i32_1 = arith.constant 0 : i32
    return %c0_i32, %c0_i32_0 : i32, i32
  }
  func.func @transform_11(%arg0: i32) -> (i32, i32) {
    %c0_i32 = arith.constant 0 : i32
    %c0_i32_0 = arith.constant 0 : i32
    %c0_i32_1 = arith.constant 0 : i32
    return %c0_i32, %c0_i32_0 : i32, i32
  }
  func.func @transform_12(%arg0: i32) -> (i32, i32) {
    %c0_i32 = arith.constant 0 : i32
    %c0_i32_0 = arith.constant 0 : i32
    %c0_i32_1 = arith.constant 0 : i32
    return %c0_i32, %c0_i32_0 : i32, i32
  }
  func.func @transform_13(%arg0: i32) -> (i32, i32) {
    %c0_i32 = arith.constant 0 : i32
    %c0_i32_0 = arith.constant 0 : i32
    return %arg0, %c0_i32 : i32, i32
  }
}

</mosaic_0001>

<llo_original>
// kernel: tpu_custom_call.1
$region0: #{tpu_custom_call.1}
  #allocation0 [shape = 'u32[]', space=smem, size = 0x4, offset = 0x4, fixed_abs, tag = 'smem constant byte address 0x4 - core index']
  #allocation1 [shape = 'u32[144,128]{1,0:T(1,128)}', space=vmem, size = 0x12000, scoped, tag = 'internal scratch']
  %s0 = inlined_call_operand.vmem [shape: f32[32,4], index: 0, kind: input, shape index: {}]
  %s1 = inlined_call_operand.vmem [shape: f32[4,32], index: 1, kind: input, shape index: {}]
  %s2 = inlined_call_operand.vmem [shape: bf16[32,64], index: 2, kind: input, shape index: {}]
  %s3 = inlined_call_operand.vmem [shape: bf16[32,64], index: 3, kind: input, shape index: {}]
  %s4 = inlined_call_operand.vmem [shape: f32[1,32], index: 4, kind: input, shape index: {}]
  %s5 = inlined_call_operand.vmem [shape: s32[32,1], index: 5, kind: input, shape index: {}]
  %s6 = inlined_call_operand.vmem [shape: s32[1,32], index: 6, kind: input, shape index: {}]
  %s7 = inlined_call_operand.vmem [shape: f32[4,64], index: 7, kind: input, shape index: {}]
  %s8 = inlined_call_operand.vmem [shape: f32[1,64], index: 8, kind: input, shape index: {}]
  %s9 = inlined_call_operand.vmem [shape: f32[64,128], index: 9, kind: input, shape index: {}]
  %s10 = inlined_call_operand.vmem [shape: f32[1,128], index: 10, kind: input, shape index: {}]
  %s11 = inlined_call_operand.vmem [shape: f32[128,32], index: 11, kind: input, shape index: {}]
  %s12 = inlined_call_operand.vmem [shape: f32[1,32], index: 12, kind: input, shape index: {}]
  %s13 = inlined_call_operand.hbm [shape: f32[32,32], index: 13, kind: output, shape index: {}]
  %s14 = sld [smem:[#allocation0]]
  $region62: #{tpu_custom_call.1} parent=0
    _
  %s16 = ssub.s32 1, %s14
  %s17 = scalar_select 0, %s16, %s14
  $region1: #{tpu_custom_call.1} parent=0
    #allocation2 [shape = 'u8[16384]{0}', space=vmem, size = 0x4000, scoped, tag = 'output window, operand 0, single buffered']
    #allocation3 [shape = 's32[1]{0}', space=sflag, size = 0x4, scoped, tag = 'scoped memory for tpu_custom_call.1']
    %18 = vsyncpa [#allocation3], 0
    // Predicated region
    $region2: #{tpu_custom_call.1} parent=1 // pred_check
      _
    $region3: #{tpu_custom_call.1} parent=1 // pred_check_branch
      %20 = sbr.rel (0) target = $region5
    $region4: #{tpu_custom_call.1} parent=1 // pred_region
      _
    $region5: #{tpu_custom_call.1} parent=1 // pred_fallthru
      _
    // Predicated region
    $region6: #{tpu_custom_call.1} parent=1 // pred_check
      _
    $region7: #{tpu_custom_call.1} parent=1 // pred_check_branch
      %22 = sbr.rel (0) target = $region9
    $region8: #{tpu_custom_call.1} parent=1 // pred_region
      _
    $region9: #{tpu_custom_call.1} parent=1 // pred_fallthru
      _
    // Predicated region
    $region10: #{tpu_custom_call.1} parent=1 // pred_check
      _
    $region11: #{tpu_custom_call.1} parent=1 // pred_check_branch
      %24 = sbr.rel (0) target = $region13
    $region12: #{tpu_custom_call.1} parent=1 // pred_region
      _
    $region13: #{tpu_custom_call.1} parent=1 // pred_fallthru
      _
    // Predicated region
    $region14: #{tpu_custom_call.1} parent=1 // pred_check
      _
    $region15: #{tpu_custom_call.1} parent=1 // pred_check_branch
      %26 = sbr.rel (0) target = $region17
    $region16: #{tpu_custom_call.1} parent=1 // pred_region
      _
    $region17: #{tpu_custom_call.1} parent=1 // pred_fallthru
      _
    // Predicated region
    $region18: #{tpu_custom_call.1} parent=1 // pred_check
      _
    $region19: #{tpu_custom_call.1} parent=1 // pred_check_branch
      %28 = sbr.rel (0) target = $region21
    $region20: #{tpu_custom_call.1} parent=1 // pred_region
      _
    $region21: #{tpu_custom_call.1} parent=1 // pred_fallthru
      _
    // Predicated region
    $region22: #{tpu_custom_call.1} parent=1 // pred_check
      _
    $region23: #{tpu_custom_call.1} parent=1 // pred_check_branch
      %30 = sbr.rel (0) target = $region25
    $region24: #{tpu_custom_call.1} parent=1 // pred_region
      _
    $region25: #{tpu_custom_call.1} parent=1 // pred_fallthru
      _
    // Predicated region
    $region26: #{tpu_custom_call.1} parent=1 // pred_check
      _
    $region27: #{tpu_custom_call.1} parent=1 // pred_check_branch
      %32 = sbr.rel (0) target = $region29
    $region28: #{tpu_custom_call.1} parent=1 // pred_region
      _
    $region29: #{tpu_custom_call.1} parent=1 // pred_fallthru
      _
    // Predicated region
    $region30: #{tpu_custom_call.1} parent=1 // pred_check
      _
    $region31: #{tpu_custom_call.1} parent=1 // pred_check_branch
      %34 = sbr.rel (0) target = $region33
    $region32: #{tpu_custom_call.1} parent=1 // pred_region
      _
    $region33: #{tpu_custom_call.1} parent=1 // pred_fallthru
      _
    // Predicated region
    $region34: #{tpu_custom_call.1} parent=1 // pred_check
      _
    $region35: #{tpu_custom_call.1} parent=1 // pred_check_branch
      %36 = sbr.rel (0) target = $region37
    $region36: #{tpu_custom_call.1} parent=1 // pred_region
      _
    $region37: #{tpu_custom_call.1} parent=1 // pred_fallthru
      _
    // Predicated region
    $region38: #{tpu_custom_call.1} parent=1 // pred_check
      _
    $region39: #{tpu_custom_call.1} parent=1 // pred_check_branch
      %38 = sbr.rel (0) target = $region41
    $region40: #{tpu_custom_call.1} parent=1 // pred_region
      _
    $region41: #{tpu_custom_call.1} parent=1 // pred_fallthru
      _
    // Predicated region
    $region42: #{tpu_custom_call.1} parent=1 // pred_check
      _
    $region43: #{tpu_custom_call.1} parent=1 // pred_check_branch
      %40 = sbr.rel (0) target = $region45
    $region44: #{tpu_custom_call.1} parent=1 // pred_region
      _
    $region45: #{tpu_custom_call.1} parent=1 // pred_fallthru
      _
    // Predicated region
    $region46: #{tpu_custom_call.1} parent=1 // pred_check
      _
    $region47: #{tpu_custom_call.1} parent=1 // pred_check_branch
      %42 = sbr.rel (0) target = $region49
    $region48: #{tpu_custom_call.1} parent=1 // pred_region
      _
    $region49: #{tpu_custom_call.1} parent=1 // pred_fallthru
      _
    // Predicated region
    $region50: #{tpu_custom_call.1} parent=1 // pred_check
      _
    $region51: #{tpu_custom_call.1} parent=1 // pred_check_branch
      %44 = sbr.rel (0) target = $region53
    $region52: #{tpu_custom_call.1} parent=1 // pred_region
      _
    $region53: #{tpu_custom_call.1} parent=1 // pred_fallthru
      _
    %v46 = vld [vmem:[%s0] sm:$0xff]
    %v47 = vld [vmem:[%s0 + $0x8] sm:$0xff]
    %v48 = vld [vmem:[%s0 + $0x10] sm:$0xff]
    %v49 = vld [vmem:[%s0 + $0x18] sm:$0xff]
    %v50 = vld [vmem:[%s1] sm:$0xf]
    %vm51 = vcmask 31744
    %v53 = vsel %vm51, %v46, 0
    %v56 = vsel %vm51, %v47, 0
    %v59 = vsel %vm51, %v48, 0
    %v62 = vsel %vm51, %v49, 0
    %vm64 = vcmask 1043456
    %v66 = vsel %vm64, %v50, 0
    %68 = vmatprep.subr.mxu0 0.0
    %69 = vmatpush1.msra.mxu0 0.0
    %70 = vmatprep.subr.mxu0 0.0
    %71 = vmatpush1.msra.mxu0 0.0
    %72 = vmatprep.subr.mxu0 0.0
    %73 = vmatpush1.msra.mxu0 0.0
    %74 = vmatprep.subr.mxu0 0.0
    %75 = vmatpush1.msra.mxu0 0.0
    %76 = vmatprep.subr.mxu0 0.0
    %77 = vmatpush1.msra.mxu0 0.0
    %78 = vmatprep.subr.mxu0 0.0
    %79 = vmatpush1.msra.mxu0 0.0
    %80 = vmatprep.subr.mxu0 0.0
    %81 = vmatpush1.msra.mxu0 0.0
    %82 = vmatprep.subr.mxu0 0.0
    %83 = vmatpush1.msra.mxu0 0.0
    %84 = vmatprep.subr.mxu0 0.0
    %85 = vmatpush1.msra.mxu0 0.0
    %86 = vmatprep.subr.mxu0 0.0
    %87 = vmatpush1.msra.mxu0 0.0
    %88 = vmatprep.subr.mxu0 0.0
    %89 = vmatpush1.msra.mxu0 0.0
    %90 = vmatprep.subr.mxu0 0.0
    %91 = vmatpush1.msra.mxu0 0.0
    %92 = vmatprep.subr.mxu0 0.0
    %93 = vmatpush1.msra.mxu0 0.0
    %94 = vmatprep.subr.mxu0 0.0
    %95 = vmatpush1.msra.mxu0 0.0
    %96 = vmatprep.subr.mxu0 0.0
    %97 = vmatpush1.msra.mxu0 0.0
    %98 = vmatprep.subr.mxu0 0.0
    %99 = vmatpush1.msra.mxu0 %v66
    %100 = vmatprep.subr.mxu0 0.0
    %101 = vmatpush2.msra.mxu0 0.0
    %102 = vmatprep.subr.mxu0 0.0
    %103 = vmatpush2.msra.mxu0 0.0
    %104 = vmatprep.subr.mxu0 0.0
    %105 = vmatpush2.msra.mxu0 0.0
    %106 = vmatprep.subr.mxu0 0.0
    %107 = vmatpush2.msra.mxu0 0.0
    %108 = vmatprep.subr.mxu0 0.0
    %109 = vmatpush2.msra.mxu0 0.0
    %110 = vmatprep.subr.mxu0 0.0
    %111 = vmatpush2.msra.mxu0 0.0
    %112 = vmatprep.subr.mxu0 0.0
    %113 = vmatpush2.msra.mxu0 0.0
    %114 = vmatprep.subr.mxu0 0.0
    %115 = vmatpush2.msra.mxu0 0.0
    %116 = vmatprep.subr.mxu0 0.0
    %117 = vmatpush2.msra.mxu0 0.0
    %118 = vmatprep.subr.mxu0 0.0
    %119 = vmatpush2.msra.mxu0 0.0
    %120 = vmatprep.subr.mxu0 0.0
    %121 = vmatpush2.msra.mxu0 0.0
    %122 = vmatprep.subr.mxu0 0.0
    %123 = vmatpush2.msra.mxu0 0.0
    %124 = vmatprep.subr.mxu0 0.0
    %125 = vmatpush2.msra.mxu0 0.0
    %126 = vmatprep.subr.mxu0 0.0
    %127 = vmatpush2.msra.mxu0 0.0
    %128 = vmatprep.subr.mxu0 0.0
    %129 = vmatpush2.msra.mxu0 0.0
    %130 = vmatprep.subr.mxu0 0.0
    %131 = vmatpush2.msra.mxu0 0.0
    %132 = vmatprep.mubr.f32.mxu0 0.0
    %133 = vmatmul.mubr.f32.gmra.mxu0 %v53
    %v134 = vpop.f32.mrf.mxu0
    %v135 = vadd.f32 0.0, %v134
    %v136 = vpop.f32.mrf.mxu0
    %137 = vmatprep.mubr.f32.mxu0 0.0
    %138 = vmatmul.mubr.f32.gmra.mxu0 %v56
    %v139 = vpop.f32.mrf.mxu0
    %v140 = vadd.f32 0.0, %v139
    %v141 = vpop.f32.mrf.mxu0
    %142 = vmatprep.mubr.f32.mxu0 0.0
    %143 = vmatmul.mubr.f32.gmra.mxu0 %v59
    %v144 = vpop.f32.mrf.mxu0
    %v145 = vadd.f32 0.0, %v144
    %v146 = vpop.f32.mrf.mxu0
    %147 = vmatprep.mubr.f32.mxu0 0.0
    %148 = vmatmul.mubr.f32.gmra.mxu0 %v62
    %v149 = vpop.f32.mrf.mxu0
    %v150 = vadd.f32 0.0, %v149
    %v151 = vpop.f32.mrf.mxu0
    %152 = vdwg.mxu0
    %v153 = vmul.f32 %v46, %v46
    %v154 = vmul.f32 %v47, %v47
    %v155 = vmul.f32 %v48, %v48
    %v156 = vmul.f32 %v49, %v49
    %v157 = vsel %vm51, %v153, 0.0
    %158 = vadd.xlane.f32.xlu0 %v157
    %v159 = vpop.xlane.xlu0 %158
    %v160 = vsel %vm51, %v154, 0.0
    %161 = vadd.xlane.f32.xlu0 %v160
    %v162 = vpop.xlane.xlu0 %161
    %v163 = vsel %vm51, %v155, 0.0
    %164 = vadd.xlane.f32.xlu0 %v163
    %v165 = vpop.xlane.xlu0 %164
    %v166 = vsel %vm51, %v156, 0.0
    %167 = vadd.xlane.f32.xlu0 %v166
    %v168 = vpop.xlane.xlu0 %167
    %v169 = vld [vmem:[%s4] sm:$0x1]
    %v171 = vlaneseq
    %v172 = vshrl.u32 %v171, 7
    %v173 = vsub.s32 0, %v172
    %v174 = vrot.slane %v169, %v173
    %v176 = vadd.f32 %v159, %v174
    %v177 = vadd.f32 %v162, %v174
    %v178 = vadd.f32 %v165, %v174
    %v179 = vadd.f32 %v168, %v174
    %v180 = vmul.f32 %v135, 2.0
    %v181 = vmul.f32 %v140, 2.0
    %v182 = vmul.f32 %v145, 2.0
    %v183 = vmul.f32 %v150, 2.0
    %v184 = vsub.f32 %v176, %v180
    %v185 = vsub.f32 %v177, %v181
    %v186 = vsub.f32 %v178, %v182
    %v187 = vsub.f32 %v179, %v183
    %v188 = vmax.f32 %v184, 0.0
    %v189 = vmax.f32 %v185, 0.0
    %v190 = vmax.f32 %v186, 0.0
    %v191 = vmax.f32 %v187, 0.0
    %v192 = vlaneseq
    %v193 = vand.u32 %v192, 127
    %v194 = vlaneseq
    %v195 = vshrl.u32 %v194, 7
    %v196 = vadd.s32 %v195, 8
    %v197 = vadd.s32 %v195, 16
    %v198 = vadd.s32 %v195, 24
    %s199 = smul.u32 0, 32
    %v200 = vstv %s199
    %v201 = vadd.s32 %v195, %v200
    %v202 = vadd.s32 %v196, %v200
    %v203 = vadd.s32 %v197, %v200
    %v204 = vadd.s32 %v198, %v200
    %v205 = vld [vmem:[%s5] sm:$0xff]
    %v206 = vld [vmem:[%s5 + $0x8] sm:$0xff]
    %v207 = vld [vmem:[%s5 + $0x10] sm:$0xff]
    %v208 = vld [vmem:[%s5 + $0x18] sm:$0xff]
    %v209 = vld [vmem:[%s6] sm:$0x1]
    %210 = vset.pattern.permute.xlu0 0
    %211 = vperm.xlu0 %210, %v205
    %v212 = vpop.permute.xlu0 %211
    %213 = vset.pattern.permute.xlu0 0
    %214 = vperm.xlu0 %213, %v206
    %v215 = vpop.permute.xlu0 %214
    %216 = vset.pattern.permute.xlu0 0
    %217 = vperm.xlu0 %216, %v207
    %v218 = vpop.permute.xlu0 %217
    %219 = vset.pattern.permute.xlu0 0
    %220 = vperm.xlu0 %219, %v208
    %v221 = vpop.permute.xlu0 %220
    %v222 = vlaneseq
    %v223 = vshrl.u32 %v222, 7
    %v224 = vsub.s32 0, %v223
    %v225 = vrot.slane %v209, %v224
    %vm226 = vcmp.eq.s32.totalorder %v212, %v225
    %vm227 = vcmp.eq.s32.totalorder %v215, %v225
    %vm228 = vcmp.eq.s32.totalorder %v218, %v225
    %vm229 = vcmp.eq.s32.totalorder %v221, %v225
    %vm230 = vcmp.ne.s32.totalorder %v193, %v201
    %vm231 = vcmp.ne.s32.totalorder %v193, %v202
    %vm232 = vcmp.ne.s32.totalorder %v193, %v203
    %vm233 = vcmp.ne.s32.totalorder %v193, %v204
    %vm234 = vmand %vm226, %vm230
    %vm235 = vmand %vm227, %vm231
    %vm236 = vmand %vm228, %vm232
    %vm237 = vmand %vm229, %vm233
    %v238 = vsel %vm234, %v188, 1e+30
    %v239 = vsel %vm235, %v189, 1e+30
    %v240 = vsel %vm236, %v190, 1e+30
    %v241 = vsel %vm237, %v191, 1e+30
    %v246 = vand.u32 %v238, 4294967264
    %v247 = vand.u32 %v239, 4294967264
    %v248 = vand.u32 %v240, 4294967264
    %v249 = vand.u32 %v241, 4294967264
    %v250 = vor.u32 %v246, %v193
    %v251 = vor.u32 %v247, %v193
    %v252 = vor.u32 %v248, %v193
    %v253 = vor.u32 %v249, %v193
    %v254 = vld [vmem:[%s7] sm:$0xf]
    %v255 = vpack.c.bf16 %v47, %v46
    %v256 = vpack.c.bf16 %v49, %v48
    %v257 = vpack.c.bf16 %v254, %v254
    %v258 = vld [vmem:[%s8] sm:$0x1]
    %v260 = vlaneseq
    %v261 = vshrl.u32 %v260, 7
    %v262 = vsub.s32 0, %v261
    %v263 = vrot.slane %v258, %v262
    %v266 = vsel %vm51, %v255, 0
    %v269 = vsel %vm51, %v256, 0
    %vm271 = vcmask 1041408
    %v273 = vsel %vm271, %v257, 0
    %275 = vmatprep.subr.bf16.mxu0 0
    %276 = vmatpush1.bf16.msra.mxu0 0
    %277 = vmatprep.subr.bf16.mxu0 0
    %278 = vmatpush1.bf16.msra.mxu0 0
    %279 = vmatprep.subr.bf16.mxu0 0
    %280 = vmatpush1.bf16.msra.mxu0 0
    %281 = vmatprep.subr.bf16.mxu0 0
    %282 = vmatpush1.bf16.msra.mxu0 0
    %283 = vmatprep.subr.bf16.mxu0 0
    %284 = vmatpush1.bf16.msra.mxu0 0
    %285 = vmatprep.subr.bf16.mxu0 0
    %286 = vmatpush1.bf16.msra.mxu0 0
    %287 = vmatprep.subr.bf16.mxu0 0
    %288 = vmatpush1.bf16.msra.mxu0 0
    %289 = vmatprep.subr.bf16.mxu0 0
    %290 = vmatpush1.bf16.msra.mxu0 %v273
    %291 = vmatprep.subr.bf16.mxu0 0
    %292 = vmatpush2.bf16.msra.mxu0 0
    %293 = vmatprep.subr.bf16.mxu0 0
    %294 = vmatpush2.bf16.msra.mxu0 0
    %295 = vmatprep.subr.bf16.mxu0 0
    %296 = vmatpush2.bf16.msra.mxu0 0
    %297 = vmatprep.subr.bf16.mxu0 0
    %298 = vmatpush2.bf16.msra.mxu0 0
    %299 = vmatprep.subr.bf16.mxu0 0
    %300 = vmatpush2.bf16.msra.mxu0 0
    %301 = vmatprep.subr.bf16.mxu0 0
    %302 = vmatpush2.bf16.msra.mxu0 0
    %303 = vmatprep.subr.bf16.mxu0 0
    %304 = vmatpush2.bf16.msra.mxu0 0
    %305 = vmatprep.subr.bf16.mxu0 0
    %306 = vmatpush2.bf16.msra.mxu0 0
    %307 = vmatprep.mubr.bf16.mxu0 0
    %308 = vmatmul.mubr.bf16.gmra.mxu0 %v266
    %v309 = vpop.f32.mrf.mxu0
    %v310 = vadd.f32 %v263, %v309
    %v311 = vpop.f32.mrf.mxu0
    %v312 = vpop.f32.mrf.mxu0
    %v313 = vadd.f32 %v263, %v312
    %v314 = vpop.f32.mrf.mxu0
    %315 = vmatprep.mubr.bf16.mxu0 0
    %316 = vmatmul.mubr.bf16.gmra.mxu0 %v269
    %v317 = vpop.f32.mrf.mxu0
    %v318 = vadd.f32 %v263, %v317
    %v319 = vpop.f32.mrf.mxu0
    %v320 = vpop.f32.mrf.mxu0
    %v321 = vadd.f32 %v263, %v320
    %v322 = vpop.f32.mrf.mxu0
    %323 = vdwg.mxu0
    %v324 = vld [vmem:[%s2] sm:$0xf]
    %v325 = vld [vmem:[%s2 + $0x4] sm:$0xf]
    %v326 = vld [vmem:[%s2 + $0x8] sm:$0xf]
    %v327 = vld [vmem:[%s2 + $0xc] sm:$0xf]
    %v328 = vld [vmem:[%s3] sm:$0xf]
    %v329 = vld [vmem:[%s3 + $0x4] sm:$0xf]
    %v330 = vld [vmem:[%s3 + $0x8] sm:$0xf]
    %v331 = vld [vmem:[%s3 + $0xc] sm:$0xf]
    %v332 = vunpack.c.l.bf16 %v328
    %v333 = vunpack.c.l.bf16 %v329
    %v334 = vunpack.c.l.bf16 %v330
    %v335 = vunpack.c.l.bf16 %v331
    %v336 = vld [vmem:[%s9] sm:$0xff]
    %v337 = vld [vmem:[%s9 + $0x8] sm:$0xff]
    %v338 = vld [vmem:[%s9 + $0x10] sm:$0xff]
    %v339 = vld [vmem:[%s9 + $0x18] sm:$0xff]
    %v340 = vld [vmem:[%s9 + $0x20] sm:$0xff]
    %v341 = vld [vmem:[%s9 + $0x28] sm:$0xff]
    %v342 = vld [vmem:[%s9 + $0x30] sm:$0xff]
    %v343 = vld [vmem:[%s9 + $0x38] sm:$0xff]
    %v344 = vld [vmem:[%s10] sm:$0x1]
    %v345 = vadd.f32 %v310, %v332
    %v346 = vadd.f32 %v313, %v333
    %v347 = vadd.f32 %v318, %v334
    %v348 = vadd.f32 %v321, %v335
    %v349 = vmax.f32 %v345, 0.0
    %v350 = vmax.f32 %v346, 0.0
    %v351 = vmax.f32 %v347, 0.0
    %v352 = vmax.f32 %v348, 0.0
    %v353 = vpack.c.bf16 %v350, %v349
    %v354 = vpack.c.bf16 %v352, %v351
    %v355 = vpack.c.bf16 %v337, %v336
    %v356 = vpack.c.bf16 %v339, %v338
    %v357 = vpack.c.bf16 %v341, %v340
    %v358 = vpack.c.bf16 %v343, %v342
    %v360 = vlaneseq
    %v361 = vshrl.u32 %v360, 7
    %v362 = vsub.s32 0, %v361
    %v363 = vrot.slane %v344, %v362
    %vm365 = vcmask 523264
    %v367 = vsel %vm365, %v353, 0
    %v370 = vsel %vm365, %v354, 0
    %372 = vmatprep.subr.bf16.mxu0 0
    %373 = vmatpush1.bf16.msra.mxu0 0
    %374 = vmatprep.subr.bf16.mxu0 0
    %375 = vmatpush1.bf16.msra.mxu0 0
    %376 = vmatprep.subr.bf16.mxu0 0
    %377 = vmatpush1.bf16.msra.mxu0 0
    %378 = vmatprep.subr.bf16.mxu0 0
    %379 = vmatpush1.bf16.msra.mxu0 0
    %380 = vmatprep.subr.bf16.mxu0 0
    %381 = vmatpush1.bf16.msra.mxu0 %v358
    %382 = vmatprep.subr.bf16.mxu0 0
    %383 = vmatpush1.bf16.msra.mxu0 %v357
    %384 = vmatprep.subr.bf16.mxu0 0
    %385 = vmatpush1.bf16.msra.mxu0 %v356
    %386 = vmatprep.subr.bf16.mxu0 0
    %387 = vmatpush1.bf16.msra.mxu0 %v355
    %388 = vmatprep.subr.bf16.mxu0 0
    %389 = vmatpush2.bf16.msra.mxu0 0
    %390 = vmatprep.subr.bf16.mxu0 0
    %391 = vmatpush2.bf16.msra.mxu0 0
    %392 = vmatprep.subr.bf16.mxu0 0
    %393 = vmatpush2.bf16.msra.mxu0 0
    %394 = vmatprep.subr.bf16.mxu0 0
    %395 = vmatpush2.bf16.msra.mxu0 0
    %396 = vmatprep.subr.bf16.mxu0 0
    %397 = vmatpush2.bf16.msra.mxu0 0
    %398 = vmatprep.subr.bf16.mxu0 0
    %399 = vmatpush2.bf16.msra.mxu0 0
    %400 = vmatprep.subr.bf16.mxu0 0
    %401 = vmatpush2.bf16.msra.mxu0 0
    %402 = vmatprep.subr.bf16.mxu0 0
    %403 = vmatpush2.bf16.msra.mxu0 0
    %404 = vmatprep.mubr.bf16.mxu0 0
    %405 = vmatmul.mubr.bf16.gmra.mxu0 %v367
    %v406 = vpop.f32.mrf.mxu0
    %v407 = vadd.f32 %v363, %v406
    %v408 = vpop.f32.mrf.mxu0
    %v409 = vpop.f32.mrf.mxu0
    %v410 = vadd.f32 %v363, %v409
    %v411 = vpop.f32.mrf.mxu0
    %412 = vmatprep.mubr.bf16.mxu0 0
    %413 = vmatmul.mubr.bf16.gmra.mxu0 %v370
    %v414 = vpop.f32.mrf.mxu0
    %v415 = vadd.f32 %v363, %v414
    %v416 = vpop.f32.mrf.mxu0
    %v417 = vpop.f32.mrf.mxu0
    %v418 = vadd.f32 %v363, %v417
    %v419 = vpop.f32.mrf.mxu0
    %420 = vdwg.mxu0
    %v421 = vmax.f32 %v407, 0.0
    %v422 = vmax.f32 %v410, 0.0
    %v423 = vmax.f32 %v415, 0.0
    %v424 = vmax.f32 %v418, 0.0
    %vm425 = vcmask 261120
    %v426 = vsel %vm425, %v250, 2147483647
    %v427 = vand.u32 %v426, 65535
    %v428 = vshra.s32 %v426, 16
    %v429 = vcvt.s32.f32 %v427
    %v430 = vcvt.s32.f32 %v428
    %431 = vmin.xlane.f32.xlu0 %v430
    %v432 = vpop.xlane.xlu0 %431
    %vm433 = vcmp.eq.f32.partialorder %v430, %v432
    %v434 = vsel %vm433, %v429, inf
    %435 = vmin.xlane.f32.xlu0 %v434
    %v436 = vpop.xlane.xlu0 %435
    %v437 = vcvt.f32.s32 %v436
    %v438 = vcvt.f32.s32 %v432
    %v439 = vshll.u32 %v438, 16
    %v440 = vadd.s32 %v439, %v437
    %v441 = vsel %vm425, %v251, 2147483647
    %v442 = vand.u32 %v441, 65535
    %v443 = vshra.s32 %v441, 16
    %v444 = vcvt.s32.f32 %v442
    %v445 = vcvt.s32.f32 %v443
    %446 = vmin.xlane.f32.xlu0 %v445
    %v447 = vpop.xlane.xlu0 %446
    %vm448 = vcmp.eq.f32.partialorder %v445, %v447
    %v449 = vsel %vm448, %v444, inf
    %450 = vmin.xlane.f32.xlu0 %v449
    %v451 = vpop.xlane.xlu0 %450
    %v452 = vcvt.f32.s32 %v451
    %v453 = vcvt.f32.s32 %v447
    %v454 = vshll.u32 %v453, 16
    %v455 = vadd.s32 %v454, %v452
    %v456 = vsel %vm425, %v252, 2147483647
    %v457 = vand.u32 %v456, 65535
    %v458 = vshra.s32 %v456, 16
    %v459 = vcvt.s32.f32 %v457
    %v460 = vcvt.s32.f32 %v458
    %461 = vmin.xlane.f32.xlu0 %v460
    %v462 = vpop.xlane.xlu0 %461
    %vm463 = vcmp.eq.f32.partialorder %v460, %v462
    %v464 = vsel %vm463, %v459, inf
    %465 = vmin.xlane.f32.xlu0 %v464
    %v466 = vpop.xlane.xlu0 %465
    %v467 = vcvt.f32.s32 %v466
    %v468 = vcvt.f32.s32 %v462
    %v469 = vshll.u32 %v468, 16
    %v470 = vadd.s32 %v469, %v467
    %v471 = vsel %vm425, %v253, 2147483647
    %v472 = vand.u32 %v471, 65535
    %v473 = vshra.s32 %v471, 16
    %v474 = vcvt.s32.f32 %v472
    %v475 = vcvt.s32.f32 %v473
    %476 = vmin.xlane.f32.xlu0 %v475
    %v477 = vpop.xlane.xlu0 %476
    %vm478 = vcmp.eq.f32.partialorder %v475, %v477
    %v479 = vsel %vm478, %v474, inf
    %480 = vmin.xlane.f32.xlu0 %v479
    %v481 = vpop.xlane.xlu0 %480
    %v482 = vcvt.f32.s32 %v481
    %v483 = vcvt.f32.s32 %v477
    %v484 = vshll.u32 %v483, 16
    %v485 = vadd.s32 %v484, %v482
    %vm486 = vcmp.eq.s32.totalorder %v250, %v440
    %vm487 = vcmp.eq.s32.totalorder %v251, %v455
    %vm488 = vcmp.eq.s32.totalorder %v252, %v470
    %vm489 = vcmp.eq.s32.totalorder %v253, %v485
    %v490 = vsel %vm486, 2147483647, %v250
    %v491 = vsel %vm487, 2147483647, %v251
    %v492 = vsel %vm488, 2147483647, %v252
    %v493 = vsel %vm489, 2147483647, %v253
    %v494 = vsel %vm486, 1, 0
    %v495 = vsel %vm487, 1, 0
    %v496 = vsel %vm488, 1, 0
    %v497 = vsel %vm489, 1, 0
    %v498 = vcvt.s32.f32 %v494
    %v499 = vcvt.s32.f32 %v495
    %v500 = vcvt.s32.f32 %v496
    %v501 = vcvt.s32.f32 %v497
    %v502 = vpack.c.bf16 %v499, %v498
    %v503 = vpack.c.bf16 %v501, %v500
    %v508 = vunpack.c.l.b16 %v324
    %v509 = vunpack.c.l.b16 %v325
    %v510 = vunpack.c.l.b16 %v326
    %v511 = vunpack.c.l.b16 %v327
    %v512 = vpack.c.b16 %v509, %v508
    %v513 = vpack.c.b16 %v511, %v510
    %v517 = vsel %vm425, %v502, 0
    %v520 = vsel %vm425, %v503, 0
    %522 = vmatprep.subr.bf16.mxu0 0
    %523 = vmatpush1.bf16.msra.mxu0 0
    %524 = vmatprep.subr.bf16.mxu0 0
    %525 = vmatpush1.bf16.msra.mxu0 0
    %526 = vmatprep.subr.bf16.mxu0 0
    %527 = vmatpush1.bf16.msra.mxu0 0
    %528 = vmatprep.subr.bf16.mxu0 0
    %529 = vmatpush1.bf16.msra.mxu0 0
    %530 = vmatprep.subr.bf16.mxu0 0
    %531 = vmatpush1.bf16.msra.mxu0 0
    %532 = vmatprep.subr.bf16.mxu0 0
    %533 = vmatpush1.bf16.msra.mxu0 0
    %534 = vmatprep.subr.bf16.mxu0 0
    %535 = vmatpush1.bf16.msra.mxu0 %v513
    %536 = vmatprep.subr.bf16.mxu0 0
    %537 = vmatpush1.bf16.msra.mxu0 %v512
    %538 = vmatprep.subr.bf16.mxu0 0
    %539 = vmatpush2.bf16.msra.mxu0 0
    %540 = vmatprep.subr.bf16.mxu0 0
    %541 = vmatpush2.bf16.msra.mxu0 0
    %542 = vmatprep.subr.bf16.mxu0 0
    %543 = vmatpush2.bf16.msra.mxu0 0
    %544 = vmatprep.subr.bf16.mxu0 0
    %545 = vmatpush2.bf16.msra.mxu0 0
    %546 = vmatprep.subr.bf16.mxu0 0
    %547 = vmatpush2.bf16.msra.mxu0 0
    %548 = vmatprep.subr.bf16.mxu0 0
    %549 = vmatpush2.bf16.msra.mxu0 0
    %550 = vmatprep.subr.bf16.mxu0 0
    %551 = vmatpush2.bf16.msra.mxu0 0
    %552 = vmatprep.subr.bf16.mxu0 0
    %553 = vmatpush2.bf16.msra.mxu0 0
    %554 = vmatprep.mubr.bf16.mxu0 0
    %555 = vmatmul.mubr.bf16.gmra.mxu0 %v517
    %v556 = vpop.f32.mrf.mxu0
    %v557 = vadd.f32 0.0, %v556
    %v558 = vpop.f32.mrf.mxu0
    %v559 = vpop.f32.mrf.mxu0
    %v560 = vadd.f32 0.0, %v559
    %v561 = vpop.f32.mrf.mxu0
    %562 = vmatprep.mubr.bf16.mxu0 0
    %563 = vmatmul.mubr.bf16.gmra.mxu0 %v520
    %v564 = vpop.f32.mrf.mxu0
    %v565 = vadd.f32 0.0, %v564
    %v566 = vpop.f32.mrf.mxu0
    %v567 = vpop.f32.mrf.mxu0
    %v568 = vadd.f32 0.0, %v567
    %v569 = vpop.f32.mrf.mxu0
    %570 = vdwg.mxu0
    %vm571 = vcmp.lt.s32.totalorder %v440, 1892283082
    %vm572 = vcmp.lt.s32.totalorder %v455, 1892283082
    %vm573 = vcmp.lt.s32.totalorder %v470, 1892283082
    %vm574 = vcmp.lt.s32.totalorder %v485, 1892283082
    %v575 = vsel %vm571, 1, 0
    %v576 = vsel %vm572, 1, 0
    %v577 = vsel %vm573, 1, 0
    %v578 = vsel %vm574, 1, 0
    %vm579 = vcmp.eq.s32.totalorder %v575, 1
    %vm580 = vcmp.eq.s32.totalorder %v576, 1
    %vm581 = vcmp.eq.s32.totalorder %v577, 1
    %vm582 = vcmp.eq.s32.totalorder %v578, 1
    %v583 = vsel %vm579, %v557, %v332
    %v584 = vsel %vm580, %v560, %v333
    %v585 = vsel %vm581, %v565, %v334
    %v586 = vsel %vm582, %v568, %v335
    %v587 = vadd.f32 %v310, %v583
    %v588 = vadd.f32 %v313, %v584
    %v589 = vadd.f32 %v318, %v585
    %v590 = vadd.f32 %v321, %v586
    %v591 = vmax.f32 %v587, 0.0
    %v592 = vmax.f32 %v588, 0.0
    %v593 = vmax.f32 %v589, 0.0
    %v594 = vmax.f32 %v590, 0.0
    %v595 = vpack.c.bf16 %v592, %v591
    %v596 = vpack.c.bf16 %v594, %v593
    %v598 = vsel %vm365, %v595, 0
    %v601 = vsel %vm365, %v596, 0
    %603 = vmatprep.subr.bf16.mxu0 0
    %604 = vmatpush1.bf16.msra.mxu0 0
    %605 = vmatprep.subr.bf16.mxu0 0
    %606 = vmatpush1.bf16.msra.mxu0 0
    %607 = vmatprep.subr.bf16.mxu0 0
    %608 = vmatpush1.bf16.msra.mxu0 0
    %609 = vmatprep.subr.bf16.mxu0 0
    %610 = vmatpush1.bf16.msra.mxu0 0
    %611 = vmatprep.subr.bf16.mxu0 0
    %612 = vmatpush1.bf16.msra.mxu0 %v358
    %613 = vmatprep.subr.bf16.mxu0 0
    %614 = vmatpush1.bf16.msra.mxu0 %v357
    %615 = vmatprep.subr.bf16.mxu0 0
    %616 = vmatpush1.bf16.msra.mxu0 %v356
    %617 = vmatprep.subr.bf16.mxu0 0
    %618 = vmatpush1.bf16.msra.mxu0 %v355
    %619 = vmatprep.subr.bf16.mxu0 0
    %620 = vmatpush2.bf16.msra.mxu0 0
    %621 = vmatprep.subr.bf16.mxu0 0
    %622 = vmatpush2.bf16.msra.mxu0 0
    %623 = vmatprep.subr.bf16.mxu0 0
    %624 = vmatpush2.bf16.msra.mxu0 0
    %625 = vmatprep.subr.bf16.mxu0 0
    %626 = vmatpush2.bf16.msra.mxu0 0
    %627 = vmatprep.subr.bf16.mxu0 0
    %628 = vmatpush2.bf16.msra.mxu0 0
    %629 = vmatprep.subr.bf16.mxu0 0
    %630 = vmatpush2.bf16.msra.mxu0 0
    %631 = vmatprep.subr.bf16.mxu0 0
    %632 = vmatpush2.bf16.msra.mxu0 0
    %633 = vmatprep.subr.bf16.mxu0 0
    %634 = vmatpush2.bf16.msra.mxu0 0
    %635 = vmatprep.mubr.bf16.mxu0 0
    %636 = vmatmul.mubr.bf16.gmra.mxu0 %v598
    %v637 = vpop.f32.mrf.mxu0
    %v638 = vadd.f32 %v363, %v637
    %v639 = vpop.f32.mrf.mxu0
    %v640 = vpop.f32.mrf.mxu0
    %v641 = vadd.f32 %v363, %v640
    %v642 = vpop.f32.mrf.mxu0
    %643 = vmatprep.mubr.bf16.mxu0 0
    %644 = vmatmul.mubr.bf16.gmra.mxu0 %v601
    %v645 = vpop.f32.mrf.mxu0
    %v646 = vadd.f32 %v363, %v645
    %v647 = vpop.f32.mrf.mxu0
    %v648 = vpop.f32.mrf.mxu0
    %v649 = vadd.f32 %v363, %v648
    %v650 = vpop.f32.mrf.mxu0
    %651 = vdwg.mxu0
    %v652 = vmax.f32 %v638, 0.0
    %v653 = vmax.f32 %v641, 0.0
    %v654 = vmax.f32 %v646, 0.0
    %v655 = vmax.f32 %v649, 0.0
    %v656 = vadd.f32 %v421, %v652
    %v657 = vadd.f32 %v422, %v653
    %v658 = vadd.f32 %v423, %v654
    %v659 = vadd.f32 %v424, %v655
    %v660 = vsel %vm425, %v490, 2147483647
    %v661 = vand.u32 %v660, 65535
    %v662 = vshra.s32 %v660, 16
    %v663 = vcvt.s32.f32 %v661
    %v664 = vcvt.s32.f32 %v662
    %665 = vmin.xlane.f32.xlu0 %v664
    %v666 = vpop.xlane.xlu0 %665
    %vm667 = vcmp.eq.f32.partialorder %v664, %v666
    %v668 = vsel %vm667, %v663, inf
    %669 = vmin.xlane.f32.xlu0 %v668
    %v670 = vpop.xlane.xlu0 %669
    %v671 = vcvt.f32.s32 %v670
    %v672 = vcvt.f32.s32 %v666
    %v673 = vshll.u32 %v672, 16
    %v674 = vadd.s32 %v673, %v671
    %v675 = vsel %vm425, %v491, 2147483647
    %v676 = vand.u32 %v675, 65535
    %v677 = vshra.s32 %v675, 16
    %v678 = vcvt.s32.f32 %v676
    %v679 = vcvt.s32.f32 %v677
    %680 = vmin.xlane.f32.xlu0 %v679
    %v681 = vpop.xlane.xlu0 %680
    %vm682 = vcmp.eq.f32.partialorder %v679, %v681
    %v683 = vsel %vm682, %v678, inf
    %684 = vmin.xlane.f32.xlu0 %v683
    %v685 = vpop.xlane.xlu0 %684
    %v686 = vcvt.f32.s32 %v685
    %v687 = vcvt.f32.s32 %v681
    %v688 = vshll.u32 %v687, 16
    %v689 = vadd.s32 %v688, %v686
    %v690 = vsel %vm425, %v492, 2147483647
    %v691 = vand.u32 %v690, 65535
    %v692 = vshra.s32 %v690, 16
    %v693 = vcvt.s32.f32 %v691
    %v694 = vcvt.s32.f32 %v692
    %695 = vmin.xlane.f32.xlu0 %v694
    %v696 = vpop.xlane.xlu0 %695
    %vm697 = vcmp.eq.f32.partialorder %v694, %v696
    %v698 = vsel %vm697, %v693, inf
    %699 = vmin.xlane.f32.xlu0 %v698
    %v700 = vpop.xlane.xlu0 %699
    %v701 = vcvt.f32.s32 %v700
    %v702 = vcvt.f32.s32 %v696
    %v703 = vshll.u32 %v702, 16
    %v704 = vadd.s32 %v703, %v701
    %v705 = vsel %vm425, %v493, 2147483647
    %v706 = vand.u32 %v705, 65535
    %v707 = vshra.s32 %v705, 16
    %v708 = vcvt.s32.f32 %v706
    %v709 = vcvt.s32.f32 %v707
    %710 = vmin.xlane.f32.xlu0 %v709
    %v711 = vpop.xlane.xlu0 %710
    %vm712 = vcmp.eq.f32.partialorder %v709, %v711
    %v713 = vsel %vm712, %v708, inf
    %714 = vmin.xlane.f32.xlu0 %v713
    %v715 = vpop.xlane.xlu0 %714
    %v716 = vcvt.f32.s32 %v715
    %v717 = vcvt.f32.s32 %v711
    %v718 = vshll.u32 %v717, 16
    %v719 = vadd.s32 %v718, %v716
    %vm720 = vcmp.eq.s32.totalorder %v490, %v674
    %vm721 = vcmp.eq.s32.totalorder %v491, %v689
    %vm722 = vcmp.eq.s32.totalorder %v492, %v704
    %vm723 = vcmp.eq.s32.totalorder %v493, %v719
    %v724 = vsel %vm720, 2147483647, %v490
    %v725 = vsel %vm721, 2147483647, %v491
    %v726 = vsel %vm722, 2147483647, %v492
    %v727 = vsel %vm723, 2147483647, %v493
    %v728 = vsel %vm720, 1, 0
    %v729 = vsel %vm721, 1, 0
    %v730 = vsel %vm722, 1, 0
    %v731 = vsel %vm723, 1, 0
    %v732 = vcvt.s32.f32 %v728
    %v733 = vcvt.s32.f32 %v729
    %v734 = vcvt.s32.f32 %v730
    %v735 = vcvt.s32.f32 %v731
    %v736 = vpack.c.bf16 %v733, %v732
    %v737 = vpack.c.bf16 %v735, %v734
    %v739 = vsel %vm425, %v736, 0
    %v742 = vsel %vm425, %v737, 0
    %744 = vmatprep.subr.bf16.mxu0 0
    %745 = vmatpush1.bf16.msra.mxu0 0
    %746 = vmatprep.subr.bf16.mxu0 0
    %747 = vmatpush1.bf16.msra.mxu0 0
    %748 = vmatprep.subr.bf16.mxu0 0
    %749 = vmatpush1.bf16.msra.mxu0 0
    %750 = vmatprep.subr.bf16.mxu0 0
    %751 = vmatpush1.bf16.msra.mxu0 0
    %752 = vmatprep.subr.bf16.mxu0 0
    %753 = vmatpush1.bf16.msra.mxu0 0
    %754 = vmatprep.subr.bf16.mxu0 0
    %755 = vmatpush1.bf16.msra.mxu0 0
    %756 = vmatprep.subr.bf16.mxu0 0
    %757 = vmatpush1.bf16.msra.mxu0 %v513
    %758 = vmatprep.subr.bf16.mxu0 0
    %759 = vmatpush1.bf16.msra.mxu0 %v512
    %760 = vmatprep.subr.bf16.mxu0 0
    %761 = vmatpush2.bf16.msra.mxu0 0
    %762 = vmatprep.subr.bf16.mxu0 0
    %763 = vmatpush2.bf16.msra.mxu0 0
    %764 = vmatprep.subr.bf16.mxu0 0
    %765 = vmatpush2.bf16.msra.mxu0 0
    %766 = vmatprep.subr.bf16.mxu0 0
    %767 = vmatpush2.bf16.msra.mxu0 0
    %768 = vmatprep.subr.bf16.mxu0 0
    %769 = vmatpush2.bf16.msra.mxu0 0
    %770 = vmatprep.subr.bf16.mxu0 0
    %771 = vmatpush2.bf16.msra.mxu0 0
    %772 = vmatprep.subr.bf16.mxu0 0
    %773 = vmatpush2.bf16.msra.mxu0 0
    %774 = vmatprep.subr.bf16.mxu0 0
    %775 = vmatpush2.bf16.msra.mxu0 0
    %776 = vmatprep.mubr.bf16.mxu0 0
    %777 = vmatmul.mubr.bf16.gmra.mxu0 %v739
    %v778 = vpop.f32.mrf.mxu0
    %v779 = vadd.f32 0.0, %v778
    %v780 = vpop.f32.mrf.mxu0
    %v781 = vpop.f32.mrf.mxu0
    %v782 = vadd.f32 0.0, %v781
    %v783 = vpop.f32.mrf.mxu0
    %784 = vmatprep.mubr.bf16.mxu0 0
    %785 = vmatmul.mubr.bf16.gmra.mxu0 %v742
    %v786 = vpop.f32.mrf.mxu0
    %v787 = vadd.f32 0.0, %v786
    %v788 = vpop.f32.mrf.mxu0
    %v789 = vpop.f32.mrf.mxu0
    %v790 = vadd.f32 0.0, %v789
    %v791 = vpop.f32.mrf.mxu0
    %792 = vdwg.mxu0
    %vm793 = vcmp.lt.s32.totalorder %v674, 1892283082
    %vm794 = vcmp.lt.s32.totalorder %v689, 1892283082
    %vm795 = vcmp.lt.s32.totalorder %v704, 1892283082
    %vm796 = vcmp.lt.s32.totalorder %v719, 1892283082
    %v797 = vsel %vm793, 1, 0
    %v798 = vsel %vm794, 1, 0
    %v799 = vsel %vm795, 1, 0
    %v800 = vsel %vm796, 1, 0
    %vm801 = vcmp.eq.s32.totalorder %v797, 1
    %vm802 = vcmp.eq.s32.totalorder %v798, 1
    %vm803 = vcmp.eq.s32.totalorder %v799, 1
    %vm804 = vcmp.eq.s32.totalorder %v800, 1
    %v805 = vsel %vm801, %v779, %v332
    %v806 = vsel %vm802, %v782, %v333
    %v807 = vsel %vm803, %v787, %v334
    %v808 = vsel %vm804, %v790, %v335
    %v809 = vadd.f32 %v310, %v805
    %v810 = vadd.f32 %v313, %v806
    %v811 = vadd.f32 %v318, %v807
    %v812 = vadd.f32 %v321, %v808
    %v813 = vmax.f32 %v809, 0.0
    %v814 = vmax.f32 %v810, 0.0
    %v815 = vmax.f32 %v811, 0.0
    %v816 = vmax.f32 %v812, 0.0
    %v817 = vpack.c.bf16 %v814, %v813
    %v818 = vpack.c.bf16 %v816, %v815
    %v820 = vsel %vm365, %v817, 0
    %v823 = vsel %vm365, %v818, 0
    %825 = vmatprep.subr.bf16.mxu0 0
    %826 = vmatpush1.bf16.msra.mxu0 0
    %827 = vmatprep.subr.bf16.mxu0 0
    %828 = vmatpush1.bf16.msra.mxu0 0
    %829 = vmatprep.subr.bf16.mxu0 0
    %830 = vmatpush1.bf16.msra.mxu0 0
    %831 = vmatprep.subr.bf16.mxu0 0
    %832 = vmatpush1.bf16.msra.mxu0 0
    %833 = vmatprep.subr.bf16.mxu0 0
    %834 = vmatpush1.bf16.msra.mxu0 %v358
    %835 = vmatprep.subr.bf16.mxu0 0
    %836 = vmatpush1.bf16.msra.mxu0 %v357
    %837 = vmatprep.subr.bf16.mxu0 0
    %838 = vmatpush1.bf16.msra.mxu0 %v356
    %839 = vmatprep.subr.bf16.mxu0 0
    %840 = vmatpush1.bf16.msra.mxu0 %v355
    %841 = vmatprep.subr.bf16.mxu0 0
    %842 = vmatpush2.bf16.msra.mxu0 0
    %843 = vmatprep.subr.bf16.mxu0 0
    %844 = vmatpush2.bf16.msra.mxu0 0
    %845 = vmatprep.subr.bf16.mxu0 0
    %846 = vmatpush2.bf16.msra.mxu0 0
    %847 = vmatprep.subr.bf16.mxu0 0
    %848 = vmatpush2.bf16.msra.mxu0 0
    %849 = vmatprep.subr.bf16.mxu0 0
    %850 = vmatpush2.bf16.msra.mxu0 0
    %851 = vmatprep.subr.bf16.mxu0 0
    %852 = vmatpush2.bf16.msra.mxu0 0
    %853 = vmatprep.subr.bf16.mxu0 0
    %854 = vmatpush2.bf16.msra.mxu0 0
    %855 = vmatprep.subr.bf16.mxu0 0
    %856 = vmatpush2.bf16.msra.mxu0 0
    %857 = vmatprep.mubr.bf16.mxu0 0
    %858 = vmatmul.mubr.bf16.gmra.mxu0 %v820
    %v859 = vpop.f32.mrf.mxu0
    %v860 = vadd.f32 %v363, %v859
    %v861 = vpop.f32.mrf.mxu0
    %v862 = vpop.f32.mrf.mxu0
    %v863 = vadd.f32 %v363, %v862
    %v864 = vpop.f32.mrf.mxu0
    %865 = vmatprep.mubr.bf16.mxu0 0
    %866 = vmatmul.mubr.bf16.gmra.mxu0 %v823
    %v867 = vpop.f32.mrf.mxu0
    %v868 = vadd.f32 %v363, %v867
    %v869 = vpop.f32.mrf.mxu0
    %v870 = vpop.f32.mrf.mxu0
    %v871 = vadd.f32 %v363, %v870
    %v872 = vpop.f32.mrf.mxu0
    %873 = vdwg.mxu0
    %v874 = vmax.f32 %v860, 0.0
    %v875 = vmax.f32 %v863, 0.0
    %v876 = vmax.f32 %v868, 0.0
    %v877 = vmax.f32 %v871, 0.0
    %v878 = vadd.f32 %v656, %v874
    %v879 = vadd.f32 %v657, %v875
    %v880 = vadd.f32 %v658, %v876
    %v881 = vadd.f32 %v659, %v877
    %v882 = vsel %vm425, %v724, 2147483647
    %v883 = vand.u32 %v882, 65535
    %v884 = vshra.s32 %v882, 16
    %v885 = vcvt.s32.f32 %v883
    %v886 = vcvt.s32.f32 %v884
    %887 = vmin.xlane.f32.xlu0 %v886
    %v888 = vpop.xlane.xlu0 %887
    %vm889 = vcmp.eq.f32.partialorder %v886, %v888
    %v890 = vsel %vm889, %v885, inf
    %891 = vmin.xlane.f32.xlu0 %v890
    %v892 = vpop.xlane.xlu0 %891
    %v893 = vcvt.f32.s32 %v892
    %v894 = vcvt.f32.s32 %v888
    %v895 = vshll.u32 %v894, 16
    %v896 = vadd.s32 %v895, %v893
    %v897 = vsel %vm425, %v725, 2147483647
    %v898 = vand.u32 %v897, 65535
    %v899 = vshra.s32 %v897, 16
    %v900 = vcvt.s32.f32 %v898
    %v901 = vcvt.s32.f32 %v899
    %902 = vmin.xlane.f32.xlu0 %v901
    %v903 = vpop.xlane.xlu0 %902
    %vm904 = vcmp.eq.f32.partialorder %v901, %v903
    %v905 = vsel %vm904, %v900, inf
    %906 = vmin.xlane.f32.xlu0 %v905
    %v907 = vpop.xlane.xlu0 %906
    %v908 = vcvt.f32.s32 %v907
    %v909 = vcvt.f32.s32 %v903
    %v910 = vshll.u32 %v909, 16
    %v911 = vadd.s32 %v910, %v908
    %v912 = vsel %vm425, %v726, 2147483647
    %v913 = vand.u32 %v912, 65535
    %v914 = vshra.s32 %v912, 16
    %v915 = vcvt.s32.f32 %v913
    %v916 = vcvt.s32.f32 %v914
    %917 = vmin.xlane.f32.xlu0 %v916
    %v918 = vpop.xlane.xlu0 %917
    %vm919 = vcmp.eq.f32.partialorder %v916, %v918
    %v920 = vsel %vm919, %v915, inf
    %921 = vmin.xlane.f32.xlu0 %v920
    %v922 = vpop.xlane.xlu0 %921
    %v923 = vcvt.f32.s32 %v922
    %v924 = vcvt.f32.s32 %v918
    %v925 = vshll.u32 %v924, 16
    %v926 = vadd.s32 %v925, %v923
    %v927 = vsel %vm425, %v727, 2147483647
    %v928 = vand.u32 %v927, 65535
    %v929 = vshra.s32 %v927, 16
    %v930 = vcvt.s32.f32 %v928
    %v931 = vcvt.s32.f32 %v929
    %932 = vmin.xlane.f32.xlu0 %v931
    %v933 = vpop.xlane.xlu0 %932
    %vm934 = vcmp.eq.f32.partialorder %v931, %v933
    %v935 = vsel %vm934, %v930, inf
    %936 = vmin.xlane.f32.xlu0 %v935
    %v937 = vpop.xlane.xlu0 %936
    %v938 = vcvt.f32.s32 %v937
    %v939 = vcvt.f32.s32 %v933
    %v940 = vshll.u32 %v939, 16
    %v941 = vadd.s32 %v940, %v938
    %vm942 = vcmp.eq.s32.totalorder %v724, %v896
    %vm943 = vcmp.eq.s32.totalorder %v725, %v911
    %vm944 = vcmp.eq.s32.totalorder %v726, %v926
    %vm945 = vcmp.eq.s32.totalorder %v727, %v941
    %v946 = vsel %vm942, 2147483647, %v724
    %v947 = vsel %vm943, 2147483647, %v725
    %v948 = vsel %vm944, 2147483647, %v726
    %v949 = vsel %vm945, 2147483647, %v727
    %v950 = vsel %vm942, 1, 0
    %v951 = vsel %vm943, 1, 0
    %v952 = vsel %vm944, 1, 0
    %v953 = vsel %vm945, 1, 0
    %v954 = vcvt.s32.f32 %v950
    %v955 = vcvt.s32.f32 %v951
    %v956 = vcvt.s32.f32 %v952
    %v957 = vcvt.s32.f32 %v953
    %v958 = vpack.c.bf16 %v955, %v954
    %v959 = vpack.c.bf16 %v957, %v956
    %v961 = vsel %vm425, %v958, 0
    %v964 = vsel %vm425, %v959, 0
    %966 = vmatprep.subr.bf16.mxu0 0
    %967 = vmatpush1.bf16.msra.mxu0 0
    %968 = vmatprep.subr.bf16.mxu0 0
    %969 = vmatpush1.bf16.msra.mxu0 0
    %970 = vmatprep.subr.bf16.mxu0 0
    %971 = vmatpush1.bf16.msra.mxu0 0
    %972 = vmatprep.subr.bf16.mxu0 0
    %973 = vmatpush1.bf16.msra.mxu0 0
    %974 = vmatprep.subr.bf16.mxu0 0
    %975 = vmatpush1.bf16.msra.mxu0 0
    %976 = vmatprep.subr.bf16.mxu0 0
    %977 = vmatpush1.bf16.msra.mxu0 0
    %978 = vmatprep.subr.bf16.mxu0 0
    %979 = vmatpush1.bf16.msra.mxu0 %v513
    %980 = vmatprep.subr.bf16.mxu0 0
    %981 = vmatpush1.bf16.msra.mxu0 %v512
    %982 = vmatprep.subr.bf16.mxu0 0
    %983 = vmatpush2.bf16.msra.mxu0 0
    %984 = vmatprep.subr.bf16.mxu0 0
    %985 = vmatpush2.bf16.msra.mxu0 0
    %986 = vmatprep.subr.bf16.mxu0 0
    %987 = vmatpush2.bf16.msra.mxu0 0
    %988 = vmatprep.subr.bf16.mxu0 0
    %989 = vmatpush2.bf16.msra.mxu0 0
    %990 = vmatprep.subr.bf16.mxu0 0
    %991 = vmatpush2.bf16.msra.mxu0 0
    %992 = vmatprep.subr.bf16.mxu0 0
    %993 = vmatpush2.bf16.msra.mxu0 0
    %994 = vmatprep.subr.bf16.mxu0 0
    %995 = vmatpush2.bf16.msra.mxu0 0
    %996 = vmatprep.subr.bf16.mxu0 0
    %997 = vmatpush2.bf16.msra.mxu0 0
    %998 = vmatprep.mubr.bf16.mxu0 0
    %999 = vmatmul.mubr.bf16.gmra.mxu0 %v961
    %v1000 = vpop.f32.mrf.mxu0
    %v1001 = vadd.f32 0.0, %v1000
    %v1002 = vpop.f32.mrf.mxu0
    %v1003 = vpop.f32.mrf.mxu0
    %v1004 = vadd.f32 0.0, %v1003
    %v1005 = vpop.f32.mrf.mxu0
    %1006 = vmatprep.mubr.bf16.mxu0 0
    %1007 = vmatmul.mubr.bf16.gmra.mxu0 %v964
    %v1008 = vpop.f32.mrf.mxu0
    %v1009 = vadd.f32 0.0, %v1008
    %v1010 = vpop.f32.mrf.mxu0
    %v1011 = vpop.f32.mrf.mxu0
    %v1012 = vadd.f32 0.0, %v1011
    %v1013 = vpop.f32.mrf.mxu0
    %1014 = vdwg.mxu0
    %vm1015 = vcmp.lt.s32.totalorder %v896, 1892283082
    %vm1016 = vcmp.lt.s32.totalorder %v911, 1892283082
    %vm1017 = vcmp.lt.s32.totalorder %v926, 1892283082
    %vm1018 = vcmp.lt.s32.totalorder %v941, 1892283082
    %v1019 = vsel %vm1015, 1, 0
    %v1020 = vsel %vm1016, 1, 0
    %v1021 = vsel %vm1017, 1, 0
    %v1022 = vsel %vm1018, 1, 0
    %vm1023 = vcmp.eq.s32.totalorder %v1019, 1
    %vm1024 = vcmp.eq.s32.totalorder %v1020, 1
    %vm1025 = vcmp.eq.s32.totalorder %v1021, 1
    %vm1026 = vcmp.eq.s32.totalorder %v1022, 1
    %v1027 = vsel %vm1023, %v1001, %v332
    %v1028 = vsel %vm1024, %v1004, %v333
    %v1029 = vsel %vm1025, %v1009, %v334
    %v1030 = vsel %vm1026, %v1012, %v335
    %v1031 = vadd.f32 %v310, %v1027
    %v1032 = vadd.f32 %v313, %v1028
    %v1033 = vadd.f32 %v318, %v1029
    %v1034 = vadd.f32 %v321, %v1030
    %v1035 = vmax.f32 %v1031, 0.0
    %v1036 = vmax.f32 %v1032, 0.0
    %v1037 = vmax.f32 %v1033, 0.0
    %v1038 = vmax.f32 %v1034, 0.0
    %v1039 = vpack.c.bf16 %v1036, %v1035
    %v1040 = vpack.c.bf16 %v1038, %v1037
    %v1042 = vsel %vm365, %v1039, 0
    %v1045 = vsel %vm365, %v1040, 0
    %1047 = vmatprep.subr.bf16.mxu0 0
    %1048 = vmatpush1.bf16.msra.mxu0 0
    %1049 = vmatprep.subr.bf16.mxu0 0
    %1050 = vmatpush1.bf16.msra.mxu0 0
    %1051 = vmatprep.subr.bf16.mxu0 0
    %1052 = vmatpush1.bf16.msra.mxu0 0
    %1053 = vmatprep.subr.bf16.mxu0 0
    %1054 = vmatpush1.bf16.msra.mxu0 0
    %1055 = vmatprep.subr.bf16.mxu0 0
    %1056 = vmatpush1.bf16.msra.mxu0 %v358
    %1057 = vmatprep.subr.bf16.mxu0 0
    %1058 = vmatpush1.bf16.msra.mxu0 %v357
    %1059 = vmatprep.subr.bf16.mxu0 0
    %1060 = vmatpush1.bf16.msra.mxu0 %v356
    %1061 = vmatprep.subr.bf16.mxu0 0
    %1062 = vmatpush1.bf16.msra.mxu0 %v355
    %1063 = vmatprep.subr.bf16.mxu0 0
    %1064 = vmatpush2.bf16.msra.mxu0 0
    %1065 = vmatprep.subr.bf16.mxu0 0
    %1066 = vmatpush2.bf16.msra.mxu0 0
    %1067 = vmatprep.subr.bf16.mxu0 0
    %1068 = vmatpush2.bf16.msra.mxu0 0
    %1069 = vmatprep.subr.bf16.mxu0 0
    %1070 = vmatpush2.bf16.msra.mxu0 0
    %1071 = vmatprep.subr.bf16.mxu0 0
    %1072 = vmatpush2.bf16.msra.mxu0 0
    %1073 = vmatprep.subr.bf16.mxu0 0
    %1074 = vmatpush2.bf16.msra.mxu0 0
    %1075 = vmatprep.subr.bf16.mxu0 0
    %1076 = vmatpush2.bf16.msra.mxu0 0
    %1077 = vmatprep.subr.bf16.mxu0 0
    %1078 = vmatpush2.bf16.msra.mxu0 0
    %1079 = vmatprep.mubr.bf16.mxu0 0
    %1080 = vmatmul.mubr.bf16.gmra.mxu0 %v1042
    %v1081 = vpop.f32.mrf.mxu0
    %v1082 = vadd.f32 %v363, %v1081
    %v1083 = vpop.f32.mrf.mxu0
    %v1084 = vpop.f32.mrf.mxu0
    %v1085 = vadd.f32 %v363, %v1084
    %v1086 = vpop.f32.mrf.mxu0
    %1087 = vmatprep.mubr.bf16.mxu0 0
    %1088 = vmatmul.mubr.bf16.gmra.mxu0 %v1045
    %v1089 = vpop.f32.mrf.mxu0
    %v1090 = vadd.f32 %v363, %v1089
    %v1091 = vpop.f32.mrf.mxu0
    %v1092 = vpop.f32.mrf.mxu0
    %v1093 = vadd.f32 %v363, %v1092
    %v1094 = vpop.f32.mrf.mxu0
    %1095 = vdwg.mxu0
    %v1096 = vmax.f32 %v1082, 0.0
    %v1097 = vmax.f32 %v1085, 0.0
    %v1098 = vmax.f32 %v1090, 0.0
    %v1099 = vmax.f32 %v1093, 0.0
    %v1100 = vadd.f32 %v878, %v1096
    %v1101 = vadd.f32 %v879, %v1097
    %v1102 = vadd.f32 %v880, %v1098
    %v1103 = vadd.f32 %v881, %v1099
    %v1104 = vsel %vm425, %v946, 2147483647
    %v1105 = vand.u32 %v1104, 65535
    %v1106 = vshra.s32 %v1104, 16
    %v1107 = vcvt.s32.f32 %v1105
    %v1108 = vcvt.s32.f32 %v1106
    %1109 = vmin.xlane.f32.xlu0 %v1108
    %v1110 = vpop.xlane.xlu0 %1109
    %vm1111 = vcmp.eq.f32.partialorder %v1108, %v1110
    %v1112 = vsel %vm1111, %v1107, inf
    %1113 = vmin.xlane.f32.xlu0 %v1112
    %v1114 = vpop.xlane.xlu0 %1113
    %v1115 = vcvt.f32.s32 %v1114
    %v1116 = vcvt.f32.s32 %v1110
    %v1117 = vshll.u32 %v1116, 16
    %v1118 = vadd.s32 %v1117, %v1115
    %v1119 = vsel %vm425, %v947, 2147483647
    %v1120 = vand.u32 %v1119, 65535
    %v1121 = vshra.s32 %v1119, 16
    %v1122 = vcvt.s32.f32 %v1120
    %v1123 = vcvt.s32.f32 %v1121
    %1124 = vmin.xlane.f32.xlu0 %v1123
    %v1125 = vpop.xlane.xlu0 %1124
    %vm1126 = vcmp.eq.f32.partialorder %v1123, %v1125
    %v1127 = vsel %vm1126, %v1122, inf
    %1128 = vmin.xlane.f32.xlu0 %v1127
    %v1129 = vpop.xlane.xlu0 %1128
    %v1130 = vcvt.f32.s32 %v1129
    %v1131 = vcvt.f32.s32 %v1125
    %v1132 = vshll.u32 %v1131, 16
    %v1133 = vadd.s32 %v1132, %v1130
    %v1134 = vsel %vm425, %v948, 2147483647
    %v1135 = vand.u32 %v1134, 65535
    %v1136 = vshra.s32 %v1134, 16
    %v1137 = vcvt.s32.f32 %v1135
    %v1138 = vcvt.s32.f32 %v1136
    %1139 = vmin.xlane.f32.xlu0 %v1138
    %v1140 = vpop.xlane.xlu0 %1139
    %vm1141 = vcmp.eq.f32.partialorder %v1138, %v1140
    %v1142 = vsel %vm1141, %v1137, inf
    %1143 = vmin.xlane.f32.xlu0 %v1142
    %v1144 = vpop.xlane.xlu0 %1143
    %v1145 = vcvt.f32.s32 %v1144
    %v1146 = vcvt.f32.s32 %v1140
    %v1147 = vshll.u32 %v1146, 16
    %v1148 = vadd.s32 %v1147, %v1145
    %v1149 = vsel %vm425, %v949, 2147483647
    %v1150 = vand.u32 %v1149, 65535
    %v1151 = vshra.s32 %v1149, 16
    %v1152 = vcvt.s32.f32 %v1150
    %v1153 = vcvt.s32.f32 %v1151
    %1154 = vmin.xlane.f32.xlu0 %v1153
    %v1155 = vpop.xlane.xlu0 %1154
    %vm1156 = vcmp.eq.f32.partialorder %v1153, %v1155
    %v1157 = vsel %vm1156, %v1152, inf
    %1158 = vmin.xlane.f32.xlu0 %v1157
    %v1159 = vpop.xlane.xlu0 %1158
    %v1160 = vcvt.f32.s32 %v1159
    %v1161 = vcvt.f32.s32 %v1155
    %v1162 = vshll.u32 %v1161, 16
    %v1163 = vadd.s32 %v1162, %v1160
    %vm1164 = vcmp.eq.s32.totalorder %v946, %v1118
    %vm1165 = vcmp.eq.s32.totalorder %v947, %v1133
    %vm1166 = vcmp.eq.s32.totalorder %v948, %v1148
    %vm1167 = vcmp.eq.s32.totalorder %v949, %v1163
    %v1168 = vsel %vm1164, 1, 0
    %v1169 = vsel %vm1165, 1, 0
    %v1170 = vsel %vm1166, 1, 0
    %v1171 = vsel %vm1167, 1, 0
    %v1172 = vcvt.s32.f32 %v1168
    %v1173 = vcvt.s32.f32 %v1169
    %v1174 = vcvt.s32.f32 %v1170
    %v1175 = vcvt.s32.f32 %v1171
    %v1176 = vpack.c.bf16 %v1173, %v1172
    %v1177 = vpack.c.bf16 %v1175, %v1174
    %v1179 = vsel %vm425, %v1176, 0
    %v1182 = vsel %vm425, %v1177, 0
    %1184 = vmatprep.subr.bf16.mxu0 0
    %1185 = vmatpush1.bf16.msra.mxu0 0
    %1186 = vmatprep.subr.bf16.mxu0 0
    %1187 = vmatpush1.bf16.msra.mxu0 0
    %1188 = vmatprep.subr.bf16.mxu0 0
    %1189 = vmatpush1.bf16.msra.mxu0 0
    %1190 = vmatprep.subr.bf16.mxu0 0
    %1191 = vmatpush1.bf16.msra.mxu0 0
    %1192 = vmatprep.subr.bf16.mxu0 0
    %1193 = vmatpush1.bf16.msra.mxu0 0
    %1194 = vmatprep.subr.bf16.mxu0 0
    %1195 = vmatpush1.bf16.msra.mxu0 0
    %1196 = vmatprep.subr.bf16.mxu0 0
    %1197 = vmatpush1.bf16.msra.mxu0 %v513
    %1198 = vmatprep.subr.bf16.mxu0 0
    %1199 = vmatpush1.bf16.msra.mxu0 %v512
    %1200 = vmatprep.subr.bf16.mxu0 0
    %1201 = vmatpush2.bf16.msra.mxu0 0
    %1202 = vmatprep.subr.bf16.mxu0 0
    %1203 = vmatpush2.bf16.msra.mxu0 0
    %1204 = vmatprep.subr.bf16.mxu0 0
    %1205 = vmatpush2.bf16.msra.mxu0 0
    %1206 = vmatprep.subr.bf16.mxu0 0
    %1207 = vmatpush2.bf16.msra.mxu0 0
    %1208 = vmatprep.subr.bf16.mxu0 0
    %1209 = vmatpush2.bf16.msra.mxu0 0
    %1210 = vmatprep.subr.bf16.mxu0 0
    %1211 = vmatpush2.bf16.msra.mxu0 0
    %1212 = vmatprep.subr.bf16.mxu0 0
    %1213 = vmatpush2.bf16.msra.mxu0 0
    %1214 = vmatprep.subr.bf16.mxu0 0
    %1215 = vmatpush2.bf16.msra.mxu0 0
    %1216 = vmatprep.mubr.bf16.mxu0 0
    %1217 = vmatmul.mubr.bf16.gmra.mxu0 %v1179
    %v1218 = vpop.f32.mrf.mxu0
    %v1219 = vadd.f32 0.0, %v1218
    %v1220 = vpop.f32.mrf.mxu0
    %v1221 = vpop.f32.mrf.mxu0
    %v1222 = vadd.f32 0.0, %v1221
    %v1223 = vpop.f32.mrf.mxu0
    %1224 = vmatprep.mubr.bf16.mxu0 0
    %1225 = vmatmul.mubr.bf16.gmra.mxu0 %v1182
    %v1226 = vpop.f32.mrf.mxu0
    %v1227 = vadd.f32 0.0, %v1226
    %v1228 = vpop.f32.mrf.mxu0
    %v1229 = vpop.f32.mrf.mxu0
    %v1230 = vadd.f32 0.0, %v1229
    %v1231 = vpop.f32.mrf.mxu0
    %1232 = vdwg.mxu0
    %vm1233 = vcmp.lt.s32.totalorder %v1118, 1892283082
    %vm1234 = vcmp.lt.s32.totalorder %v1133, 1892283082
    %vm1235 = vcmp.lt.s32.totalorder %v1148, 1892283082
    %vm1236 = vcmp.lt.s32.totalorder %v1163, 1892283082
    %v1237 = vsel %vm1233, 1, 0
    %v1238 = vsel %vm1234, 1, 0
    %v1239 = vsel %vm1235, 1, 0
    %v1240 = vsel %vm1236, 1, 0
    %vm1241 = vcmp.eq.s32.totalorder %v1237, 1
    %vm1242 = vcmp.eq.s32.totalorder %v1238, 1
    %vm1243 = vcmp.eq.s32.totalorder %v1239, 1
    %vm1244 = vcmp.eq.s32.totalorder %v1240, 1
    %v1245 = vsel %vm1241, %v1219, %v332
    %v1246 = vsel %vm1242, %v1222, %v333
    %v1247 = vsel %vm1243, %v1227, %v334
    %v1248 = vsel %vm1244, %v1230, %v335
    %v1249 = vadd.f32 %v310, %v1245
    %v1250 = vadd.f32 %v313, %v1246
    %v1251 = vadd.f32 %v318, %v1247
    %v1252 = vadd.f32 %v321, %v1248
    %v1253 = vmax.f32 %v1249, 0.0
    %v1254 = vmax.f32 %v1250, 0.0
    %v1255 = vmax.f32 %v1251, 0.0
    %v1256 = vmax.f32 %v1252, 0.0
    %v1257 = vpack.c.bf16 %v1254, %v1253
    %v1258 = vpack.c.bf16 %v1256, %v1255
    %v1260 = vsel %vm365, %v1257, 0
    %v1263 = vsel %vm365, %v1258, 0
    %1265 = vmatprep.subr.bf16.mxu0 0
    %1266 = vmatpush1.bf16.msra.mxu0 0
    %1267 = vmatprep.subr.bf16.mxu0 0
    %1268 = vmatpush1.bf16.msra.mxu0 0
    %1269 = vmatprep.subr.bf16.mxu0 0
    %1270 = vmatpush1.bf16.msra.mxu0 0
    %1271 = vmatprep.subr.bf16.mxu0 0
    %1272 = vmatpush1.bf16.msra.mxu0 0
    %1273 = vmatprep.subr.bf16.mxu0 0
    %1274 = vmatpush1.bf16.msra.mxu0 %v358
    %1275 = vmatprep.subr.bf16.mxu0 0
    %1276 = vmatpush1.bf16.msra.mxu0 %v357
    %1277 = vmatprep.subr.bf16.mxu0 0
    %1278 = vmatpush1.bf16.msra.mxu0 %v356
    %1279 = vmatprep.subr.bf16.mxu0 0
    %1280 = vmatpush1.bf16.msra.mxu0 %v355
    %1281 = vmatprep.subr.bf16.mxu0 0
    %1282 = vmatpush2.bf16.msra.mxu0 0
    %1283 = vmatprep.subr.bf16.mxu0 0
    %1284 = vmatpush2.bf16.msra.mxu0 0
    %1285 = vmatprep.subr.bf16.mxu0 0
    %1286 = vmatpush2.bf16.msra.mxu0 0
    %1287 = vmatprep.subr.bf16.mxu0 0
    %1288 = vmatpush2.bf16.msra.mxu0 0
    %1289 = vmatprep.subr.bf16.mxu0 0
    %1290 = vmatpush2.bf16.msra.mxu0 0
    %1291 = vmatprep.subr.bf16.mxu0 0
    %1292 = vmatpush2.bf16.msra.mxu0 0
    %1293 = vmatprep.subr.bf16.mxu0 0
    %1294 = vmatpush2.bf16.msra.mxu0 0
    %1295 = vmatprep.subr.bf16.mxu0 0
    %1296 = vmatpush2.bf16.msra.mxu0 0
    %1297 = vmatprep.mubr.bf16.mxu0 0
    %1298 = vmatmul.mubr.bf16.gmra.mxu0 %v1260
    %v1299 = vpop.f32.mrf.mxu0
    %v1300 = vadd.f32 %v363, %v1299
    %v1301 = vpop.f32.mrf.mxu0
    %v1302 = vpop.f32.mrf.mxu0
    %v1303 = vadd.f32 %v363, %v1302
    %v1304 = vpop.f32.mrf.mxu0
    %1305 = vmatprep.mubr.bf16.mxu0 0
    %1306 = vmatmul.mubr.bf16.gmra.mxu0 %v1263
    %v1307 = vpop.f32.mrf.mxu0
    %v1308 = vadd.f32 %v363, %v1307
    %v1309 = vpop.f32.mrf.mxu0
    %v1310 = vpop.f32.mrf.mxu0
    %v1311 = vadd.f32 %v363, %v1310
    %v1312 = vpop.f32.mrf.mxu0
    %1313 = vdwg.mxu0
    %v1314 = vmax.f32 %v1300, 0.0
    %v1315 = vmax.f32 %v1303, 0.0
    %v1316 = vmax.f32 %v1308, 0.0
    %v1317 = vmax.f32 %v1311, 0.0
    %v1318 = vadd.f32 %v1100, %v1314
    %v1319 = vadd.f32 %v1101, %v1315
    %v1320 = vadd.f32 %v1102, %v1316
    %v1321 = vadd.f32 %v1103, %v1317
    %v1322 = vmul.f32 %v1318, 0.2
    %v1323 = vmul.f32 %v1319, 0.2
    %v1324 = vmul.f32 %v1320, 0.2
    %v1325 = vmul.f32 %v1321, 0.2
    %v1326 = vld [vmem:[%s11] sm:$0xff]
    %v1327 = vld [vmem:[%s11 + $0x8] sm:$0xff]
    %v1328 = vld [vmem:[%s11 + $0x10] sm:$0xff]
    %v1329 = vld [vmem:[%s11 + $0x18] sm:$0xff]
    %v1330 = vld [vmem:[%s11 + $0x20] sm:$0xff]
    %v1331 = vld [vmem:[%s11 + $0x28] sm:$0xff]
    %v1332 = vld [vmem:[%s11 + $0x30] sm:$0xff]
    %v1333 = vld [vmem:[%s11 + $0x38] sm:$0xff]
    %v1334 = vld [vmem:[%s11 + $0x40] sm:$0xff]
    %v1335 = vld [vmem:[%s11 + $0x48] sm:$0xff]
    %v1336 = vld [vmem:[%s11 + $0x50] sm:$0xff]
    %v1337 = vld [vmem:[%s11 + $0x58] sm:$0xff]
    %v1338 = vld [vmem:[%s11 + $0x60] sm:$0xff]
    %v1339 = vld [vmem:[%s11 + $0x68] sm:$0xff]
    %v1340 = vld [vmem:[%s11 + $0x70] sm:$0xff]
    %v1341 = vld [vmem:[%s11 + $0x78] sm:$0xff]
    %v1342 = vpack.c.bf16 %v1323, %v1322
    %v1343 = vpack.c.bf16 %v1325, %v1324
    %v1344 = vpack.c.bf16 %v1327, %v1326
    %v1345 = vpack.c.bf16 %v1329, %v1328
    %v1346 = vpack.c.bf16 %v1331, %v1330
    %v1347 = vpack.c.bf16 %v1333, %v1332
    %v1348 = vpack.c.bf16 %v1335, %v1334
    %v1349 = vpack.c.bf16 %v1337, %v1336
    %v1350 = vpack.c.bf16 %v1339, %v1338
    %v1351 = vpack.c.bf16 %v1341, %v1340
    %v1352 = vld [vmem:[%s12] sm:$0x1]
    %v1354 = vlaneseq
    %v1355 = vshrl.u32 %v1354, 7
    %v1356 = vsub.s32 0, %v1355
    %v1357 = vrot.slane %v1352, %v1356
    %1359 = vmatprep.subr.bf16.mxu0 0
    %1360 = vmatpush1.bf16.msra.mxu0 %v1351
    %1361 = vmatprep.subr.bf16.mxu0 0
    %1362 = vmatpush1.bf16.msra.mxu0 %v1350
    %1363 = vmatprep.subr.bf16.mxu0 0
    %1364 = vmatpush1.bf16.msra.mxu0 %v1349
    %1365 = vmatprep.subr.bf16.mxu0 0
    %1366 = vmatpush1.bf16.msra.mxu0 %v1348
    %1367 = vmatprep.subr.bf16.mxu0 0
    %1368 = vmatpush1.bf16.msra.mxu0 %v1347
    %1369 = vmatprep.subr.bf16.mxu0 0
    %1370 = vmatpush1.bf16.msra.mxu0 %v1346
    %1371 = vmatprep.subr.bf16.mxu0 0
    %1372 = vmatpush1.bf16.msra.mxu0 %v1345
    %1373 = vmatprep.subr.bf16.mxu0 0
    %1374 = vmatpush1.bf16.msra.mxu0 %v1344
    %1375 = vmatprep.subr.bf16.mxu0 0
    %1376 = vmatpush2.bf16.msra.mxu0 0
    %1377 = vmatprep.subr.bf16.mxu0 0
    %1378 = vmatpush2.bf16.msra.mxu0 0
    %1379 = vmatprep.subr.bf16.mxu0 0
    %1380 = vmatpush2.bf16.msra.mxu0 0
    %1381 = vmatprep.subr.bf16.mxu0 0
    %1382 = vmatpush2.bf16.msra.mxu0 0
    %1383 = vmatprep.subr.bf16.mxu0 0
    %1384 = vmatpush2.bf16.msra.mxu0 0
    %1385 = vmatprep.subr.bf16.mxu0 0
    %1386 = vmatpush2.bf16.msra.mxu0 0
    %1387 = vmatprep.subr.bf16.mxu0 0
    %1388 = vmatpush2.bf16.msra.mxu0 0
    %1389 = vmatprep.subr.bf16.mxu0 0
    %1390 = vmatpush2.bf16.msra.mxu0 0
    %1391 = vmatprep.mubr.bf16.mxu0 0
    %1392 = vmatmul.mubr.bf16.gmra.mxu0 %v1342
    %v1393 = vpop.f32.mrf.mxu0
    %v1394 = vadd.f32 %v1357, %v1393
    %v1395 = vpop.f32.mrf.mxu0
    %v1396 = vpop.f32.mrf.mxu0
    %v1397 = vadd.f32 %v1357, %v1396
    %v1398 = vpop.f32.mrf.mxu0
    %1399 = vmatprep.mubr.bf16.mxu0 0
    %1400 = vmatmul.mubr.bf16.gmra.mxu0 %v1343
    %v1401 = vpop.f32.mrf.mxu0
    %v1402 = vadd.f32 %v1357, %v1401
    %v1403 = vpop.f32.mrf.mxu0
    %v1404 = vpop.f32.mrf.mxu0
    %v1405 = vadd.f32 %v1357, %v1404
    %v1406 = vpop.f32.mrf.mxu0
    %1407 = vdwg.mxu0
    %1408 = vst.msk [vmem:[#allocation2] sm:$0xff] %vm425, %v1394
    %1409 = vst.msk [vmem:[#allocation2 + $0x8] sm:$0xff] %vm425, %v1397
    %1410 = vst.msk [vmem:[#allocation2 + $0x10] sm:$0xff] %vm425, %v1402
    %1411 = vst.msk [vmem:[#allocation2 + $0x18] sm:$0xff] %vm425, %v1405
    // Predicated region
    $region54: #{tpu_custom_call.1} parent=1 // pred_check
      _
    $region55: #{tpu_custom_call.1} parent=1 // pred_check_branch
      %1413 = sbr.rel (0) target = $region57
    $region56: #{tpu_custom_call.1} parent=1 // pred_region
      %s1415 = ssub.s32 512, 512
      %1416 = vsyncadd [#allocation3], %s1415
      %s1417 = sshll.u32 [#allocation2], 4
      %s1418 = int_to_ptr.vmem [resolvable:$true] %s1417
      %1423 = dma.vmem_to_hbm [thread:$0]  %s1418, 512, %s13, [#allocation3], 128, 128, 8
    $region57: #{tpu_custom_call.1} parent=1 // pred_fallthru
      _
    // Predicated region
    $region58: #{tpu_custom_call.1} parent=1 // pred_check
      _
    $region59: #{tpu_custom_call.1} parent=1 // pred_check_branch
      %1425 = sbr.rel (0) target = $region61
    $region60: #{tpu_custom_call.1} parent=1 // pred_region
      %1426 = dma.done [#allocation3], 512
    $region61: #{tpu_custom_call.1} parent=1 // pred_fallthru
      _
    %1427 = vsyncpa [#allocation3], 1

</llo_original>
